<compile_context>
chip_gen: v7x
topology: tpu7x:2x2x1
jax: 0.10.0
libtpu: 0.0.40
codegen_flags: <defaults>
</compile_context>

<pallas_src>
import functools

import jax
import jax.numpy as jnp
from jax import lax
from jax.experimental import pallas as pl
from jax.experimental.pallas import tpu as pltpu

LOG_STD_MIN = -5.0
LOG_STD_MAX = 2.0


# ----------------------------------------------------------------------------
# In-kernel helpers
# ----------------------------------------------------------------------------
def _silu(z):
    # SiLU(z) = z * sigmoid(z); sigmoid via tanh (stable, lowers to the EUP).
    return z * (0.5 * (jnp.tanh(0.5 * z) + 1.0))


def _attn_consts(na, hid, dtype):
    """0/1 selector matrices for lane-packed attention, built from iota only
    (no integer div/mod, no extra kernel operands)."""
    C = na * hid
    # E (C, na): E[r, i] = 1 iff i*hid <= r < (i+1)*hid      (per-agent block-sum)
    r = lax.broadcasted_iota(jnp.int32, (C, na), 0)
    i0 = lax.broadcasted_iota(jnp.int32, (C, na), 1) * hid
    E = jnp.logical_and(r >= i0, r < i0 + hid).astype(dtype)
    # ET (na, C): ET[i, c] = 1 iff i*hid <= c < (i+1)*hid    (per-agent broadcast)
    j0 = lax.broadcasted_iota(jnp.int32, (na, C), 0) * hid
    c = lax.broadcasted_iota(jnp.int32, (na, C), 1)
    ET = jnp.logical_and(c >= j0, c < j0 + hid).astype(dtype)
    # T_k (C, C): T_k[r, c] = 1 iff r == k*hid + (c mod hid)
    #   (broadcast agent-k's hid features into every agent block)
    rr = lax.broadcasted_iota(jnp.int32, (C, C), 0)
    cc = lax.broadcasted_iota(jnp.int32, (C, C), 1)
    Ts = []
    for k in range(na):
        in_blk = jnp.logical_and(rr >= k * hid, rr < (k + 1) * hid)
        diff = cc - rr + k * hid                 # == c - (r - k*hid)
        same = diff == 0
        for i in range(1, na):
            same = jnp.logical_or(same, diff == i * hid)
        Ts.append(jnp.logical_and(in_blk, same).astype(dtype))
    return E, ET, Ts


def _attention_packed(h, E, ET, Ts):
    """softmax(h_i . h_j, over j) @ h on the lane-packed (TM, na*hid) layout."""
    na = E.shape[1]
    f32 = jnp.float32
    hjb, scores = [], []
    for k in range(na):
        bk = jnp.dot(h, Ts[k], preferred_element_type=f32)           # (TM, C)
        hjb.append(bk)                                               # agent-k bcast
        scores.append(jnp.dot(h * bk, E, preferred_element_type=f32))  # S[:, :, k]
    m = scores[0]
    for k in range(1, na):
        m = jnp.maximum(m, scores[k])
    exps = [jnp.exp(s - m) for s in scores]
    den = exps[0]
    for k in range(1, na):
        den = den + exps[k]
    r0 = pl.reciprocal(den, approx=True)          # EUP vrcp seed
    inv = r0 * (2.0 - den * r0)                   # one Newton step -> f32 accuracy
    out = None
    for k in range(na):
        w = exps[k] * inv                         # (TM, na) = p[:, :, k]
        term = jnp.dot(w, ET, preferred_element_type=f32) * hjb[k]
        out = term if out is None else out + term
    return out                                    # (TM, C)


def msa_actor_kernel(x_ref, w_in_ref, b_in_ref, ws_act_ref, w_out_ref, b_out_ref,
                     out_ref, *, na, hid, act_dim, log_std_min, log_std_max):
    f32 = jnp.float32
    C = na * hid
    A = na * act_dim

    x = x_ref[...].astype(f32)                    # (TM, C)
    w_in = w_in_ref[...].astype(f32)              # (C, 2C)   [Wc_in | Ws_obs]
    b_in = b_in_ref[...].astype(f32)              # (2, C)    [bc_in ; bs_in]
    ws_act = ws_act_ref[...].astype(f32)          # (A, C)
    w_out = w_out_ref[...].astype(f32)            # (C, 2A)   [Wc_out | Ws_out]
    b_out = b_out_ref[...].astype(f32)            # (2, A)    [bc_out ; bs_out]

    E, ET, Ts = _attn_consts(na, hid, f32)

    # One matmul feeds both GNN first layers (shared LHS x).
    z = jnp.dot(x, w_in, preferred_element_type=f32)          # (TM, 2C)
    h = _silu(z[:, :C] + b_in[0:1, :])                        # control_policy mlp_in
    hs_obs_pre = z[:, C:]                                     # std_net obs partial

    # ---------------- control_policy ----------------
    att = _attention_packed(h, E, ET, Ts)
    u_mean = _silu(jnp.dot(att, w_out[:, :A], preferred_element_type=f32)
                   + b_out[0:1, :])                           # (TM, A)

    # ---------------- std_net (concat folded into split weights) ----------------
    hs = _silu(hs_obs_pre
               + jnp.dot(u_mean, ws_act, preferred_element_type=f32)
               + b_in[1:2, :])                                # (TM, C)
    atts = _attention_packed(hs, E, ET, Ts)
    log_std = _silu(jnp.dot(atts, w_out[:, A:], preferred_element_type=f32)
                    + b_out[1:2, :])                          # (TM, A)

    # ---------------- tail ----------------
    log_std = jnp.tanh(log_std)
    log_std = log_std_min + 0.5 * (log_std_max - log_std_min) * (log_std + 1.0)
    std = jnp.exp(log_std)

    # Single lane-packed output slab: [u_mean | std].
    out_ref[...] = jnp.concatenate([u_mean, std], axis=-1).astype(out_ref.dtype)


# ----------------------------------------------------------------------------
# Wrapper
# ----------------------------------------------------------------------------
def msa_actor_forward(x, params, *, log_std_min=LOG_STD_MIN, log_std_max=LOG_STD_MAX,
                      tile_m=1024, io_dtype=None):
    """Equivalent of MSA_actor.forward(x); returns (u_mean, std) of SquashedNormal."""
    B, na, obs_dim = x.shape
    hid = obs_dim                                  # hidden_dim of both GNNs
    act_dim = params["c_out_w"].shape[1] // na
    C = na * obs_dim
    A = na * act_dim
    io_dtype = io_dtype or x.dtype

    x_flat = x.reshape(B, C).astype(io_dtype)

    # std_net first layer: split rows into obs / act parts (folds the concat).
    w3 = params["s_in_w"].reshape(na, obs_dim + act_dim, na * hid)
    ws_obs = w3[:, :obs_dim, :].reshape(na * obs_dim, na * hid)     # (C, C)
    ws_act = w3[:, obs_dim:, :].reshape(na * act_dim, na * hid)     # (A, C)

    # Merged 2-D operands.
    w_in = jnp.concatenate([params["c_in_w"], ws_obs], axis=1)      # (C, 2C)
    b_in = jnp.stack([params["c_in_b"], params["s_in_b"]], axis=0)  # (2, C)
    w_out = jnp.concatenate([params["c_out_w"], params["s_out_w"]], axis=1)  # (C, 2A)
    b_out = jnp.stack([params["c_out_b"], params["s_out_b"]], axis=0)        # (2, A)

    # Batch tile: large tiles amortize the ~0.35us/step overhead; for mid-size
    # batches keep >= 2 grid steps so v7x's two TensorCores both get work.
    if B >= 2 * tile_m:
        TILE_M = tile_m
    elif B >= 16:
        TILE_M = max(8, (((B + 1) // 2 + 7) // 8) * 8)   # ~B/2, multiple of 8
    else:
        TILE_M = B                                       # full-array block
    grid = (pl.cdiv(B, TILE_M),)

    x_spec = pl.BlockSpec((TILE_M, C), lambda i: (i, 0))
    out_spec = pl.BlockSpec((TILE_M, 2 * A), lambda i: (i, 0))

    def resident(arr):
        # Full-array block, same block every grid step -> stays in VMEM.
        return pl.BlockSpec(arr.shape, lambda i: (0, 0))

    weight_args = [w_in, b_in, ws_act, w_out, b_out]

    kernel = functools.partial(msa_actor_kernel, na=na, hid=hid, act_dim=act_dim,
                               log_std_min=log_std_min, log_std_max=log_std_max)

    out = pl.pallas_call(
        kernel,
        out_shape=jax.ShapeDtypeStruct((B, 2 * A), io_dtype),
        grid=grid,
        in_specs=[x_spec] + [resident(a) for a in weight_args],
        out_specs=out_spec,
        compiler_params=pltpu.CompilerParams(
            dimension_semantics=("parallel",),
        ),
    )(x_flat, *weight_args)

    u_mean = out[:, :A].reshape(B, na, act_dim)
    std = out[:, A:].reshape(B, na, act_dim)
    return u_mean, std


# ----------------------------------------------------------------------------
# Deterministic synthetic parameters (PyTorch Linear shapes, stored as (in, out))
# ----------------------------------------------------------------------------
def init_params(key, n_agents, obs_dim, act_dim, dtype=jnp.float32):
    hid = obs_dim

    def linear(k, fan_in, fan_out):
        kw, kb = jax.random.split(k)
        scale = float(1.0 / (fan_in ** 0.5))
        w = jax.random.uniform(kw, (fan_in, fan_out), jnp.float32, -scale, scale)
        b = jax.random.uniform(kb, (fan_out,), jnp.float32, -scale, scale)
        return w.astype(dtype), b.astype(dtype)

    k1, k2, k3, k4 = jax.random.split(key, 4)
    c_in_w, c_in_b = linear(k1, n_agents * obs_dim, n_agents * hid)
    c_out_w, c_out_b = linear(k2, n_agents * hid, n_agents * act_dim)
    s_in_w, s_in_b = linear(k3, n_agents * (obs_dim + act_dim), n_agents * hid)
    s_out_w, s_out_b = linear(k4, n_agents * hid, n_agents * act_dim)
    return dict(c_in_w=c_in_w, c_in_b=c_in_b, c_out_w=c_out_w, c_out_b=c_out_b,
                s_in_w=s_in_w, s_in_b=s_in_b, s_out_w=s_out_w, s_out_b=s_out_b)


# ----------------------------------------------------------------------------
# Pure-JAX reference (mirrors the PyTorch module exactly)
# ----------------------------------------------------------------------------
def _attention_gnn_ref(x, w_in, b_in, w_out, b_out, na):
    B = x.shape[0]
    h = x.reshape(B, -1) @ w_in + b_in
    h = h * jax.nn.sigmoid(h)                      # MLP = Linear + SiLU
    h = h.reshape(B, na, -1)
    s = jnp.einsum('bih,bjh->bij', h, h)
    p = jax.nn.softmax(s, axis=2)
    o = jnp.einsum('bij,bjh->bih', p, h)
    o = o.reshape(B, -1) @ w_out + b_out
    o = o * jax.nn.sigmoid(o)                      # MLP = Linear + SiLU
    return o.reshape(B, na, -1)


def msa_actor_reference(x, params, na):
    u_mean = _attention_gnn_ref(x, params["c_in_w"], params["c_in_b"],
                                params["c_out_w"], params["c_out_b"], na)
    std_in = jnp.concatenate([x, u_mean], axis=2)
    ls = _attention_gnn_ref(std_in, params["s_in_w"], params["s_in_b"],
                            params["s_out_w"], params["s_out_b"], na)
    ls = jnp.tanh(ls)
    ls = LOG_STD_MIN + 0.5 * (LOG_STD_MAX - LOG_STD_MIN) * (ls + 1.0)
    return u_mean, jnp.exp(ls)


if __name__ == "__main__":
    # Config consistent with the module.
    n_agents = 4
    obs_dim = 6
    act_dim = 2

    key = jax.random.PRNGKey(0)
    k_x, k_p, k_x2 = jax.random.split(key, 3)
    params = init_params(k_p, n_agents, obs_dim, act_dim)

    # --- small case (single full-array tile) ---
    batch = 2
    x = jax.random.normal(k_x, (batch, n_agents, obs_dim), dtype=jnp.float32)
    u_mean, std = jax.block_until_ready(msa_actor_forward(x, params))
    u_ref, s_ref = msa_actor_reference(x, params, n_agents)
    assert u_mean.shape == (batch, n_agents, act_dim), u_mean.shape
    assert std.shape == (batch, n_agents, act_dim), std.shape
    assert jnp.allclose(u_mean, u_ref, atol=5e-4, rtol=5e-4), (u_mean, u_ref)
    assert jnp.allclose(std, s_ref, atol=5e-4, rtol=5e-4), (std, s_ref)

    # --- multi-tile case (>= 2 grid steps, partial last tile) ---
    batch2 = 300
    x2 = jax.random.normal(k_x2, (batch2, n_agents, obs_dim), dtype=jnp.float32)
    u2, s2 = jax.block_until_ready(msa_actor_forward(x2, params))
    u2_ref, s2_ref = msa_actor_reference(x2, params, n_agents)
    assert jnp.allclose(u2, u2_ref, atol=5e-4, rtol=5e-4)
    assert jnp.allclose(s2, s2_ref, atol=5e-4, rtol=5e-4)

    print("KERNEL_OK")
</pallas_src>

<mosaic_0001>
module attributes {stable_mosaic.version = 11 : i64} {
  func.func @msa_actor_kernel(%arg0: i32, %arg1: memref<2x24xf32, #tpu.memory_space<vmem>>, %arg2: memref<24x48xf32, #tpu.memory_space<vmem>>, %arg3: memref<2x24xf32, #tpu.memory_space<vmem>>, %arg4: memref<8x24xf32, #tpu.memory_space<vmem>>, %arg5: memref<24x16xf32, #tpu.memory_space<vmem>>, %arg6: memref<2x8xf32, #tpu.memory_space<vmem>>, %arg7: memref<2x16xf32, #tpu.memory_space<vmem>>) attributes {dimension_semantics = [#tpu.dimension_semantics<parallel>], iteration_bounds = array<i64: 1>, scalar_prefetch = 0 : i64, scratch_operands = 0 : i64, tpu.core_type = #tpu.core_type<tc>, window_params = [{transform_indices = @transform_0, window_bounds = array<i64: 2, 24>}, {pipeline_mode = #tpu.pipeline_mode<synchronous>, transform_indices = @transform_1, window_bounds = array<i64: 24, 48>}, {pipeline_mode = #tpu.pipeline_mode<synchronous>, transform_indices = @transform_2, window_bounds = array<i64: 2, 24>}, {pipeline_mode = #tpu.pipeline_mode<synchronous>, transform_indices = @transform_3, window_bounds = array<i64: 8, 24>}, {pipeline_mode = #tpu.pipeline_mode<synchronous>, transform_indices = @transform_4, window_bounds = array<i64: 24, 16>}, {pipeline_mode = #tpu.pipeline_mode<synchronous>, transform_indices = @transform_5, window_bounds = array<i64: 2, 8>}, {transform_indices = @transform_6, window_bounds = array<i64: 2, 16>}]} {
    %c0 = arith.constant 0 : index
    %c0_0 = arith.constant 0 : index
    %0 = vector.load %arg1[%c0, %c0_0] : memref<2x24xf32, #tpu.memory_space<vmem>>, vector<2x24xf32>
    %c0_1 = arith.constant 0 : index
    %c0_2 = arith.constant 0 : index
    %1 = vector.load %arg2[%c0_1, %c0_2] : memref<24x48xf32, #tpu.memory_space<vmem>>, vector<24x48xf32>
    %c0_3 = arith.constant 0 : index
    %c0_4 = arith.constant 0 : index
    %2 = vector.load %arg3[%c0_3, %c0_4] : memref<2x24xf32, #tpu.memory_space<vmem>>, vector<2x24xf32>
    %c0_5 = arith.constant 0 : index
    %c0_6 = arith.constant 0 : index
    %3 = vector.load %arg4[%c0_5, %c0_6] : memref<8x24xf32, #tpu.memory_space<vmem>>, vector<8x24xf32>
    %c0_7 = arith.constant 0 : index
    %c0_8 = arith.constant 0 : index
    %4 = vector.load %arg5[%c0_7, %c0_8] : memref<24x16xf32, #tpu.memory_space<vmem>>, vector<24x16xf32>
    %c0_9 = arith.constant 0 : index
    %c0_10 = arith.constant 0 : index
    %5 = vector.load %arg6[%c0_9, %c0_10] : memref<2x8xf32, #tpu.memory_space<vmem>>, vector<2x8xf32>
    %6 = tpu.iota {dimensions = array<i32: 0>} : vector<24x4xi32>
    %7 = tpu.iota {dimensions = array<i32: 1>} : vector<24x4xi32>
    %c6_i32 = arith.constant 6 : i32
    %8 = vector.broadcast %c6_i32 : i32 to vector<24x4xi32>
    %9 = arith.muli %7, %8 : vector<24x4xi32>
    %10 = arith.cmpi sge, %6, %9 : vector<24x4xi32>
    %c6_i32_11 = arith.constant 6 : i32
    %11 = vector.broadcast %c6_i32_11 : i32 to vector<24x4xi32>
    %12 = arith.addi %9, %11 : vector<24x4xi32>
    %13 = arith.cmpi slt, %6, %12 : vector<24x4xi32>
    %14 = arith.andi %10, %13 : vector<24x4xi1>
    %15 = arith.extui %14 : vector<24x4xi1> to vector<24x4xi32>
    %16 = arith.sitofp %15 : vector<24x4xi32> to vector<24x4xf32>
    %17 = tpu.iota {dimensions = array<i32: 0>} : vector<4x24xi32>
    %c6_i32_12 = arith.constant 6 : i32
    %18 = vector.broadcast %c6_i32_12 : i32 to vector<4x24xi32>
    %19 = arith.muli %17, %18 : vector<4x24xi32>
    %20 = tpu.iota {dimensions = array<i32: 1>} : vector<4x24xi32>
    %21 = arith.cmpi sge, %20, %19 : vector<4x24xi32>
    %c6_i32_13 = arith.constant 6 : i32
    %22 = vector.broadcast %c6_i32_13 : i32 to vector<4x24xi32>
    %23 = arith.addi %19, %22 : vector<4x24xi32>
    %24 = arith.cmpi slt, %20, %23 : vector<4x24xi32>
    %25 = arith.andi %21, %24 : vector<4x24xi1>
    %26 = arith.extui %25 : vector<4x24xi1> to vector<4x24xi32>
    %27 = arith.sitofp %26 : vector<4x24xi32> to vector<4x24xf32>
    %28 = tpu.iota {dimensions = array<i32: 0>} : vector<24x24xi32>
    %29 = tpu.iota {dimensions = array<i32: 1>} : vector<24x24xi32>
    %c0_i32 = arith.constant 0 : i32
    %30 = vector.broadcast %c0_i32 : i32 to vector<24x24xi32>
    %31 = arith.cmpi sge, %28, %30 : vector<24x24xi32>
    %c6_i32_14 = arith.constant 6 : i32
    %32 = vector.broadcast %c6_i32_14 : i32 to vector<24x24xi32>
    %33 = arith.cmpi slt, %28, %32 : vector<24x24xi32>
    %34 = arith.andi %31, %33 : vector<24x24xi1>
    %35 = arith.subi %29, %28 : vector<24x24xi32>
    %c0_i32_15 = arith.constant 0 : i32
    %36 = vector.broadcast %c0_i32_15 : i32 to vector<24x24xi32>
    %37 = arith.addi %35, %36 : vector<24x24xi32>
    %c0_i32_16 = arith.constant 0 : i32
    %38 = vector.broadcast %c0_i32_16 : i32 to vector<24x24xi32>
    %39 = arith.cmpi eq, %37, %38 : vector<24x24xi32>
    %c6_i32_17 = arith.constant 6 : i32
    %40 = vector.broadcast %c6_i32_17 : i32 to vector<24x24xi32>
    %41 = arith.cmpi eq, %37, %40 : vector<24x24xi32>
    %42 = arith.ori %39, %41 : vector<24x24xi1>
    %c12_i32 = arith.constant 12 : i32
    %43 = vector.broadcast %c12_i32 : i32 to vector<24x24xi32>
    %44 = arith.cmpi eq, %37, %43 : vector<24x24xi32>
    %45 = arith.ori %42, %44 : vector<24x24xi1>
    %c18_i32 = arith.constant 18 : i32
    %46 = vector.broadcast %c18_i32 : i32 to vector<24x24xi32>
    %47 = arith.cmpi eq, %37, %46 : vector<24x24xi32>
    %48 = arith.ori %45, %47 : vector<24x24xi1>
    %49 = arith.andi %34, %48 : vector<24x24xi1>
    %50 = arith.extui %49 : vector<24x24xi1> to vector<24x24xi32>
    %51 = arith.sitofp %50 : vector<24x24xi32> to vector<24x24xf32>
    %c6_i32_18 = arith.constant 6 : i32
    %52 = vector.broadcast %c6_i32_18 : i32 to vector<24x24xi32>
    %53 = arith.cmpi sge, %28, %52 : vector<24x24xi32>
    %c12_i32_19 = arith.constant 12 : i32
    %54 = vector.broadcast %c12_i32_19 : i32 to vector<24x24xi32>
    %55 = arith.cmpi slt, %28, %54 : vector<24x24xi32>
    %56 = arith.andi %53, %55 : vector<24x24xi1>
    %57 = arith.subi %29, %28 : vector<24x24xi32>
    %c6_i32_20 = arith.constant 6 : i32
    %58 = vector.broadcast %c6_i32_20 : i32 to vector<24x24xi32>
    %59 = arith.addi %57, %58 : vector<24x24xi32>
    %c0_i32_21 = arith.constant 0 : i32
    %60 = vector.broadcast %c0_i32_21 : i32 to vector<24x24xi32>
    %61 = arith.cmpi eq, %59, %60 : vector<24x24xi32>
    %c6_i32_22 = arith.constant 6 : i32
    %62 = vector.broadcast %c6_i32_22 : i32 to vector<24x24xi32>
    %63 = arith.cmpi eq, %59, %62 : vector<24x24xi32>
    %64 = arith.ori %61, %63 : vector<24x24xi1>
    %c12_i32_23 = arith.constant 12 : i32
    %65 = vector.broadcast %c12_i32_23 : i32 to vector<24x24xi32>
    %66 = arith.cmpi eq, %59, %65 : vector<24x24xi32>
    %67 = arith.ori %64, %66 : vector<24x24xi1>
    %c18_i32_24 = arith.constant 18 : i32
    %68 = vector.broadcast %c18_i32_24 : i32 to vector<24x24xi32>
    %69 = arith.cmpi eq, %59, %68 : vector<24x24xi32>
    %70 = arith.ori %67, %69 : vector<24x24xi1>
    %71 = arith.andi %56, %70 : vector<24x24xi1>
    %72 = arith.extui %71 : vector<24x24xi1> to vector<24x24xi32>
    %73 = arith.sitofp %72 : vector<24x24xi32> to vector<24x24xf32>
    %c12_i32_25 = arith.constant 12 : i32
    %74 = vector.broadcast %c12_i32_25 : i32 to vector<24x24xi32>
    %75 = arith.cmpi sge, %28, %74 : vector<24x24xi32>
    %c18_i32_26 = arith.constant 18 : i32
    %76 = vector.broadcast %c18_i32_26 : i32 to vector<24x24xi32>
    %77 = arith.cmpi slt, %28, %76 : vector<24x24xi32>
    %78 = arith.andi %75, %77 : vector<24x24xi1>
    %79 = arith.subi %29, %28 : vector<24x24xi32>
    %c12_i32_27 = arith.constant 12 : i32
    %80 = vector.broadcast %c12_i32_27 : i32 to vector<24x24xi32>
    %81 = arith.addi %79, %80 : vector<24x24xi32>
    %c0_i32_28 = arith.constant 0 : i32
    %82 = vector.broadcast %c0_i32_28 : i32 to vector<24x24xi32>
    %83 = arith.cmpi eq, %81, %82 : vector<24x24xi32>
    %c6_i32_29 = arith.constant 6 : i32
    %84 = vector.broadcast %c6_i32_29 : i32 to vector<24x24xi32>
    %85 = arith.cmpi eq, %81, %84 : vector<24x24xi32>
    %86 = arith.ori %83, %85 : vector<24x24xi1>
    %c12_i32_30 = arith.constant 12 : i32
    %87 = vector.broadcast %c12_i32_30 : i32 to vector<24x24xi32>
    %88 = arith.cmpi eq, %81, %87 : vector<24x24xi32>
    %89 = arith.ori %86, %88 : vector<24x24xi1>
    %c18_i32_31 = arith.constant 18 : i32
    %90 = vector.broadcast %c18_i32_31 : i32 to vector<24x24xi32>
    %91 = arith.cmpi eq, %81, %90 : vector<24x24xi32>
    %92 = arith.ori %89, %91 : vector<24x24xi1>
    %93 = arith.andi %78, %92 : vector<24x24xi1>
    %94 = arith.extui %93 : vector<24x24xi1> to vector<24x24xi32>
    %95 = arith.sitofp %94 : vector<24x24xi32> to vector<24x24xf32>
    %c18_i32_32 = arith.constant 18 : i32
    %96 = vector.broadcast %c18_i32_32 : i32 to vector<24x24xi32>
    %97 = arith.cmpi sge, %28, %96 : vector<24x24xi32>
    %c24_i32 = arith.constant 24 : i32
    %98 = vector.broadcast %c24_i32 : i32 to vector<24x24xi32>
    %99 = arith.cmpi slt, %28, %98 : vector<24x24xi32>
    %100 = arith.andi %97, %99 : vector<24x24xi1>
    %101 = arith.subi %29, %28 : vector<24x24xi32>
    %c18_i32_33 = arith.constant 18 : i32
    %102 = vector.broadcast %c18_i32_33 : i32 to vector<24x24xi32>
    %103 = arith.addi %101, %102 : vector<24x24xi32>
    %c0_i32_34 = arith.constant 0 : i32
    %104 = vector.broadcast %c0_i32_34 : i32 to vector<24x24xi32>
    %105 = arith.cmpi eq, %103, %104 : vector<24x24xi32>
    %c6_i32_35 = arith.constant 6 : i32
    %106 = vector.broadcast %c6_i32_35 : i32 to vector<24x24xi32>
    %107 = arith.cmpi eq, %103, %106 : vector<24x24xi32>
    %108 = arith.ori %105, %107 : vector<24x24xi1>
    %c12_i32_36 = arith.constant 12 : i32
    %109 = vector.broadcast %c12_i32_36 : i32 to vector<24x24xi32>
    %110 = arith.cmpi eq, %103, %109 : vector<24x24xi32>
    %111 = arith.ori %108, %110 : vector<24x24xi1>
    %c18_i32_37 = arith.constant 18 : i32
    %112 = vector.broadcast %c18_i32_37 : i32 to vector<24x24xi32>
    %113 = arith.cmpi eq, %103, %112 : vector<24x24xi32>
    %114 = arith.ori %111, %113 : vector<24x24xi1>
    %115 = arith.andi %100, %114 : vector<24x24xi1>
    %116 = arith.extui %115 : vector<24x24xi1> to vector<24x24xi32>
    %117 = arith.sitofp %116 : vector<24x24xi32> to vector<24x24xf32>
    %cst = arith.constant dense<0.000000e+00> : vector<2x48xf32>
    %118 = tpu.matmul %0, %1, %cst {dimension_numbers = #tpu.dot_dimension_numbers<[1], [0], [0], [1], [0, 0, 1, 1], [], []>} : vector<2x24xf32>, vector<24x48xf32>, vector<2x48xf32> -> vector<2x48xf32>
    %119 = vector.extract_strided_slice %118 {offsets = [0, 0], sizes = [2, 24], strides = [1, 1]} : vector<2x48xf32> to vector<2x24xf32>
    %120 = vector.extract_strided_slice %2 {offsets = [0, 0], sizes = [1, 24], strides = [1, 1]} : vector<2x24xf32> to vector<1x24xf32>
    %121 = vector.broadcast %120 : vector<1x24xf32> to vector<2x24xf32>
    %122 = arith.addf %119, %121 : vector<2x24xf32>
    %cst_38 = arith.constant 5.000000e-01 : f32
    %123 = vector.broadcast %cst_38 : f32 to vector<2x24xf32>
    %124 = arith.mulf %123, %122 : vector<2x24xf32>
    %125 = math.tanh %124 : vector<2x24xf32>
    %cst_39 = arith.constant 1.000000e+00 : f32
    %126 = vector.broadcast %cst_39 : f32 to vector<2x24xf32>
    %127 = arith.addf %125, %126 : vector<2x24xf32>
    %cst_40 = arith.constant 5.000000e-01 : f32
    %128 = vector.broadcast %cst_40 : f32 to vector<2x24xf32>
    %129 = arith.mulf %128, %127 : vector<2x24xf32>
    %130 = arith.mulf %122, %129 : vector<2x24xf32>
    %131 = vector.extract_strided_slice %118 {offsets = [0, 24], sizes = [2, 24], strides = [1, 1]} : vector<2x48xf32> to vector<2x24xf32>
    %cst_41 = arith.constant dense<0.000000e+00> : vector<2x24xf32>
    %132 = tpu.matmul %130, %51, %cst_41 {dimension_numbers = #tpu.dot_dimension_numbers<[1], [0], [0], [1], [0, 0, 1, 1], [], []>} : vector<2x24xf32>, vector<24x24xf32>, vector<2x24xf32> -> vector<2x24xf32>
    %133 = arith.mulf %130, %132 : vector<2x24xf32>
    %cst_42 = arith.constant dense<0.000000e+00> : vector<2x4xf32>
    %134 = tpu.matmul %133, %16, %cst_42 {dimension_numbers = #tpu.dot_dimension_numbers<[1], [0], [0], [1], [0, 0, 1, 1], [], []>} : vector<2x24xf32>, vector<24x4xf32>, vector<2x4xf32> -> vector<2x4xf32>
    %cst_43 = arith.constant dense<0.000000e+00> : vector<2x24xf32>
    %135 = tpu.matmul %130, %73, %cst_43 {dimension_numbers = #tpu.dot_dimension_numbers<[1], [0], [0], [1], [0, 0, 1, 1], [], []>} : vector<2x24xf32>, vector<24x24xf32>, vector<2x24xf32> -> vector<2x24xf32>
    %136 = arith.mulf %130, %135 : vector<2x24xf32>
    %cst_44 = arith.constant dense<0.000000e+00> : vector<2x4xf32>
    %137 = tpu.matmul %136, %16, %cst_44 {dimension_numbers = #tpu.dot_dimension_numbers<[1], [0], [0], [1], [0, 0, 1, 1], [], []>} : vector<2x24xf32>, vector<24x4xf32>, vector<2x4xf32> -> vector<2x4xf32>
    %cst_45 = arith.constant dense<0.000000e+00> : vector<2x24xf32>
    %138 = tpu.matmul %130, %95, %cst_45 {dimension_numbers = #tpu.dot_dimension_numbers<[1], [0], [0], [1], [0, 0, 1, 1], [], []>} : vector<2x24xf32>, vector<24x24xf32>, vector<2x24xf32> -> vector<2x24xf32>
    %139 = arith.mulf %130, %138 : vector<2x24xf32>
    %cst_46 = arith.constant dense<0.000000e+00> : vector<2x4xf32>
    %140 = tpu.matmul %139, %16, %cst_46 {dimension_numbers = #tpu.dot_dimension_numbers<[1], [0], [0], [1], [0, 0, 1, 1], [], []>} : vector<2x24xf32>, vector<24x4xf32>, vector<2x4xf32> -> vector<2x4xf32>
    %cst_47 = arith.constant dense<0.000000e+00> : vector<2x24xf32>
    %141 = tpu.matmul %130, %117, %cst_47 {dimension_numbers = #tpu.dot_dimension_numbers<[1], [0], [0], [1], [0, 0, 1, 1], [], []>} : vector<2x24xf32>, vector<24x24xf32>, vector<2x24xf32> -> vector<2x24xf32>
    %142 = arith.mulf %130, %141 : vector<2x24xf32>
    %cst_48 = arith.constant dense<0.000000e+00> : vector<2x4xf32>
    %143 = tpu.matmul %142, %16, %cst_48 {dimension_numbers = #tpu.dot_dimension_numbers<[1], [0], [0], [1], [0, 0, 1, 1], [], []>} : vector<2x24xf32>, vector<24x4xf32>, vector<2x4xf32> -> vector<2x4xf32>
    %144 = arith.maximumf %134, %137 : vector<2x4xf32>
    %145 = arith.maximumf %144, %140 : vector<2x4xf32>
    %146 = arith.maximumf %145, %143 : vector<2x4xf32>
    %147 = arith.subf %134, %146 : vector<2x4xf32>
    %148 = math.exp %147 : vector<2x4xf32>
    %149 = arith.subf %137, %146 : vector<2x4xf32>
    %150 = math.exp %149 : vector<2x4xf32>
    %151 = arith.subf %140, %146 : vector<2x4xf32>
    %152 = math.exp %151 : vector<2x4xf32>
    %153 = arith.subf %143, %146 : vector<2x4xf32>
    %154 = math.exp %153 : vector<2x4xf32>
    %155 = arith.addf %148, %150 : vector<2x4xf32>
    %156 = arith.addf %155, %152 : vector<2x4xf32>
    %157 = arith.addf %156, %154 : vector<2x4xf32>
    %158 = tpu.reciprocal %157 {approx = true} : vector<2x4xf32> -> vector<2x4xf32>
    %159 = arith.mulf %157, %158 : vector<2x4xf32>
    %cst_49 = arith.constant 2.000000e+00 : f32
    %160 = vector.broadcast %cst_49 : f32 to vector<2x4xf32>
    %161 = arith.subf %160, %159 : vector<2x4xf32>
    %162 = arith.mulf %158, %161 : vector<2x4xf32>
    %163 = arith.mulf %148, %162 : vector<2x4xf32>
    %cst_50 = arith.constant dense<0.000000e+00> : vector<2x24xf32>
    %164 = tpu.matmul %163, %27, %cst_50 {dimension_numbers = #tpu.dot_dimension_numbers<[1], [0], [0], [1], [0, 0, 1, 1], [], []>} : vector<2x4xf32>, vector<4x24xf32>, vector<2x24xf32> -> vector<2x24xf32>
    %165 = arith.mulf %164, %132 : vector<2x24xf32>
    %166 = arith.mulf %150, %162 : vector<2x4xf32>
    %cst_51 = arith.constant dense<0.000000e+00> : vector<2x24xf32>
    %167 = tpu.matmul %166, %27, %cst_51 {dimension_numbers = #tpu.dot_dimension_numbers<[1], [0], [0], [1], [0, 0, 1, 1], [], []>} : vector<2x4xf32>, vector<4x24xf32>, vector<2x24xf32> -> vector<2x24xf32>
    %168 = arith.mulf %167, %135 : vector<2x24xf32>
    %169 = arith.addf %165, %168 : vector<2x24xf32>
    %170 = arith.mulf %152, %162 : vector<2x4xf32>
    %cst_52 = arith.constant dense<0.000000e+00> : vector<2x24xf32>
    %171 = tpu.matmul %170, %27, %cst_52 {dimension_numbers = #tpu.dot_dimension_numbers<[1], [0], [0], [1], [0, 0, 1, 1], [], []>} : vector<2x4xf32>, vector<4x24xf32>, vector<2x24xf32> -> vector<2x24xf32>
    %172 = arith.mulf %171, %138 : vector<2x24xf32>
    %173 = arith.addf %169, %172 : vector<2x24xf32>
    %174 = arith.mulf %154, %162 : vector<2x4xf32>
    %cst_53 = arith.constant dense<0.000000e+00> : vector<2x24xf32>
    %175 = tpu.matmul %174, %27, %cst_53 {dimension_numbers = #tpu.dot_dimension_numbers<[1], [0], [0], [1], [0, 0, 1, 1], [], []>} : vector<2x4xf32>, vector<4x24xf32>, vector<2x24xf32> -> vector<2x24xf32>
    %176 = arith.mulf %175, %141 : vector<2x24xf32>
    %177 = arith.addf %173, %176 : vector<2x24xf32>
    %178 = vector.extract_strided_slice %4 {offsets = [0, 0], sizes = [24, 8], strides = [1, 1]} : vector<24x16xf32> to vector<24x8xf32>
    %cst_54 = arith.constant dense<0.000000e+00> : vector<2x8xf32>
    %179 = tpu.matmul %177, %178, %cst_54 {dimension_numbers = #tpu.dot_dimension_numbers<[1], [0], [0], [1], [0, 0, 1, 1], [], []>} : vector<2x24xf32>, vector<24x8xf32>, vector<2x8xf32> -> vector<2x8xf32>
    %180 = vector.extract_strided_slice %5 {offsets = [0, 0], sizes = [1, 8], strides = [1, 1]} : vector<2x8xf32> to vector<1x8xf32>
    %181 = vector.broadcast %180 : vector<1x8xf32> to vector<2x8xf32>
    %182 = arith.addf %179, %181 : vector<2x8xf32>
    %cst_55 = arith.constant 5.000000e-01 : f32
    %183 = vector.broadcast %cst_55 : f32 to vector<2x8xf32>
    %184 = arith.mulf %183, %182 : vector<2x8xf32>
    %185 = math.tanh %184 : vector<2x8xf32>
    %cst_56 = arith.constant 1.000000e+00 : f32
    %186 = vector.broadcast %cst_56 : f32 to vector<2x8xf32>
    %187 = arith.addf %185, %186 : vector<2x8xf32>
    %cst_57 = arith.constant 5.000000e-01 : f32
    %188 = vector.broadcast %cst_57 : f32 to vector<2x8xf32>
    %189 = arith.mulf %188, %187 : vector<2x8xf32>
    %190 = arith.mulf %182, %189 : vector<2x8xf32>
    %cst_58 = arith.constant dense<0.000000e+00> : vector<2x24xf32>
    %191 = tpu.matmul %190, %3, %cst_58 {dimension_numbers = #tpu.dot_dimension_numbers<[1], [0], [0], [1], [0, 0, 1, 1], [], []>} : vector<2x8xf32>, vector<8x24xf32>, vector<2x24xf32> -> vector<2x24xf32>
    %192 = arith.addf %131, %191 : vector<2x24xf32>
    %193 = vector.extract_strided_slice %2 {offsets = [1, 0], sizes = [1, 24], strides = [1, 1]} : vector<2x24xf32> to vector<1x24xf32>
    %194 = vector.broadcast %193 : vector<1x24xf32> to vector<2x24xf32>
    %195 = arith.addf %192, %194 : vector<2x24xf32>
    %cst_59 = arith.constant 5.000000e-01 : f32
    %196 = vector.broadcast %cst_59 : f32 to vector<2x24xf32>
    %197 = arith.mulf %196, %195 : vector<2x24xf32>
    %198 = math.tanh %197 : vector<2x24xf32>
    %cst_60 = arith.constant 1.000000e+00 : f32
    %199 = vector.broadcast %cst_60 : f32 to vector<2x24xf32>
    %200 = arith.addf %198, %199 : vector<2x24xf32>
    %cst_61 = arith.constant 5.000000e-01 : f32
    %201 = vector.broadcast %cst_61 : f32 to vector<2x24xf32>
    %202 = arith.mulf %201, %200 : vector<2x24xf32>
    %203 = arith.mulf %195, %202 : vector<2x24xf32>
    %cst_62 = arith.constant dense<0.000000e+00> : vector<2x24xf32>
    %204 = tpu.matmul %203, %51, %cst_62 {dimension_numbers = #tpu.dot_dimension_numbers<[1], [0], [0], [1], [0, 0, 1, 1], [], []>} : vector<2x24xf32>, vector<24x24xf32>, vector<2x24xf32> -> vector<2x24xf32>
    %205 = arith.mulf %203, %204 : vector<2x24xf32>
    %cst_63 = arith.constant dense<0.000000e+00> : vector<2x4xf32>
    %206 = tpu.matmul %205, %16, %cst_63 {dimension_numbers = #tpu.dot_dimension_numbers<[1], [0], [0], [1], [0, 0, 1, 1], [], []>} : vector<2x24xf32>, vector<24x4xf32>, vector<2x4xf32> -> vector<2x4xf32>
    %cst_64 = arith.constant dense<0.000000e+00> : vector<2x24xf32>
    %207 = tpu.matmul %203, %73, %cst_64 {dimension_numbers = #tpu.dot_dimension_numbers<[1], [0], [0], [1], [0, 0, 1, 1], [], []>} : vector<2x24xf32>, vector<24x24xf32>, vector<2x24xf32> -> vector<2x24xf32>
    %208 = arith.mulf %203, %207 : vector<2x24xf32>
    %cst_65 = arith.constant dense<0.000000e+00> : vector<2x4xf32>
    %209 = tpu.matmul %208, %16, %cst_65 {dimension_numbers = #tpu.dot_dimension_numbers<[1], [0], [0], [1], [0, 0, 1, 1], [], []>} : vector<2x24xf32>, vector<24x4xf32>, vector<2x4xf32> -> vector<2x4xf32>
    %cst_66 = arith.constant dense<0.000000e+00> : vector<2x24xf32>
    %210 = tpu.matmul %203, %95, %cst_66 {dimension_numbers = #tpu.dot_dimension_numbers<[1], [0], [0], [1], [0, 0, 1, 1], [], []>} : vector<2x24xf32>, vector<24x24xf32>, vector<2x24xf32> -> vector<2x24xf32>
    %211 = arith.mulf %203, %210 : vector<2x24xf32>
    %cst_67 = arith.constant dense<0.000000e+00> : vector<2x4xf32>
    %212 = tpu.matmul %211, %16, %cst_67 {dimension_numbers = #tpu.dot_dimension_numbers<[1], [0], [0], [1], [0, 0, 1, 1], [], []>} : vector<2x24xf32>, vector<24x4xf32>, vector<2x4xf32> -> vector<2x4xf32>
    %cst_68 = arith.constant dense<0.000000e+00> : vector<2x24xf32>
    %213 = tpu.matmul %203, %117, %cst_68 {dimension_numbers = #tpu.dot_dimension_numbers<[1], [0], [0], [1], [0, 0, 1, 1], [], []>} : vector<2x24xf32>, vector<24x24xf32>, vector<2x24xf32> -> vector<2x24xf32>
    %214 = arith.mulf %203, %213 : vector<2x24xf32>
    %cst_69 = arith.constant dense<0.000000e+00> : vector<2x4xf32>
    %215 = tpu.matmul %214, %16, %cst_69 {dimension_numbers = #tpu.dot_dimension_numbers<[1], [0], [0], [1], [0, 0, 1, 1], [], []>} : vector<2x24xf32>, vector<24x4xf32>, vector<2x4xf32> -> vector<2x4xf32>
    %216 = arith.maximumf %206, %209 : vector<2x4xf32>
    %217 = arith.maximumf %216, %212 : vector<2x4xf32>
    %218 = arith.maximumf %217, %215 : vector<2x4xf32>
    %219 = arith.subf %206, %218 : vector<2x4xf32>
    %220 = math.exp %219 : vector<2x4xf32>
    %221 = arith.subf %209, %218 : vector<2x4xf32>
    %222 = math.exp %221 : vector<2x4xf32>
    %223 = arith.subf %212, %218 : vector<2x4xf32>
    %224 = math.exp %223 : vector<2x4xf32>
    %225 = arith.subf %215, %218 : vector<2x4xf32>
    %226 = math.exp %225 : vector<2x4xf32>
    %227 = arith.addf %220, %222 : vector<2x4xf32>
    %228 = arith.addf %227, %224 : vector<2x4xf32>
    %229 = arith.addf %228, %226 : vector<2x4xf32>
    %230 = tpu.reciprocal %229 {approx = true} : vector<2x4xf32> -> vector<2x4xf32>
    %231 = arith.mulf %229, %230 : vector<2x4xf32>
    %cst_70 = arith.constant 2.000000e+00 : f32
    %232 = vector.broadcast %cst_70 : f32 to vector<2x4xf32>
    %233 = arith.subf %232, %231 : vector<2x4xf32>
    %234 = arith.mulf %230, %233 : vector<2x4xf32>
    %235 = arith.mulf %220, %234 : vector<2x4xf32>
    %cst_71 = arith.constant dense<0.000000e+00> : vector<2x24xf32>
    %236 = tpu.matmul %235, %27, %cst_71 {dimension_numbers = #tpu.dot_dimension_numbers<[1], [0], [0], [1], [0, 0, 1, 1], [], []>} : vector<2x4xf32>, vector<4x24xf32>, vector<2x24xf32> -> vector<2x24xf32>
    %237 = arith.mulf %236, %204 : vector<2x24xf32>
    %238 = arith.mulf %222, %234 : vector<2x4xf32>
    %cst_72 = arith.constant dense<0.000000e+00> : vector<2x24xf32>
    %239 = tpu.matmul %238, %27, %cst_72 {dimension_numbers = #tpu.dot_dimension_numbers<[1], [0], [0], [1], [0, 0, 1, 1], [], []>} : vector<2x4xf32>, vector<4x24xf32>, vector<2x24xf32> -> vector<2x24xf32>
    %240 = arith.mulf %239, %207 : vector<2x24xf32>
    %241 = arith.addf %237, %240 : vector<2x24xf32>
    %242 = arith.mulf %224, %234 : vector<2x4xf32>
    %cst_73 = arith.constant dense<0.000000e+00> : vector<2x24xf32>
    %243 = tpu.matmul %242, %27, %cst_73 {dimension_numbers = #tpu.dot_dimension_numbers<[1], [0], [0], [1], [0, 0, 1, 1], [], []>} : vector<2x4xf32>, vector<4x24xf32>, vector<2x24xf32> -> vector<2x24xf32>
    %244 = arith.mulf %243, %210 : vector<2x24xf32>
    %245 = arith.addf %241, %244 : vector<2x24xf32>
    %246 = arith.mulf %226, %234 : vector<2x4xf32>
    %cst_74 = arith.constant dense<0.000000e+00> : vector<2x24xf32>
    %247 = tpu.matmul %246, %27, %cst_74 {dimension_numbers = #tpu.dot_dimension_numbers<[1], [0], [0], [1], [0, 0, 1, 1], [], []>} : vector<2x4xf32>, vector<4x24xf32>, vector<2x24xf32> -> vector<2x24xf32>
    %248 = arith.mulf %247, %213 : vector<2x24xf32>
    %249 = arith.addf %245, %248 : vector<2x24xf32>
    %250 = vector.extract_strided_slice %4 {offsets = [0, 8], sizes = [24, 8], strides = [1, 1]} : vector<24x16xf32> to vector<24x8xf32>
    %cst_75 = arith.constant dense<0.000000e+00> : vector<2x8xf32>
    %251 = tpu.matmul %249, %250, %cst_75 {dimension_numbers = #tpu.dot_dimension_numbers<[1], [0], [0], [1], [0, 0, 1, 1], [], []>} : vector<2x24xf32>, vector<24x8xf32>, vector<2x8xf32> -> vector<2x8xf32>
    %252 = vector.extract_strided_slice %5 {offsets = [1, 0], sizes = [1, 8], strides = [1, 1]} : vector<2x8xf32> to vector<1x8xf32>
    %253 = vector.broadcast %252 : vector<1x8xf32> to vector<2x8xf32>
    %254 = arith.addf %251, %253 : vector<2x8xf32>
    %cst_76 = arith.constant 5.000000e-01 : f32
    %255 = vector.broadcast %cst_76 : f32 to vector<2x8xf32>
    %256 = arith.mulf %255, %254 : vector<2x8xf32>
    %257 = math.tanh %256 : vector<2x8xf32>
    %cst_77 = arith.constant 1.000000e+00 : f32
    %258 = vector.broadcast %cst_77 : f32 to vector<2x8xf32>
    %259 = arith.addf %257, %258 : vector<2x8xf32>
    %cst_78 = arith.constant 5.000000e-01 : f32
    %260 = vector.broadcast %cst_78 : f32 to vector<2x8xf32>
    %261 = arith.mulf %260, %259 : vector<2x8xf32>
    %262 = arith.mulf %254, %261 : vector<2x8xf32>
    %263 = math.tanh %262 : vector<2x8xf32>
    %cst_79 = arith.constant 1.000000e+00 : f32
    %264 = vector.broadcast %cst_79 : f32 to vector<2x8xf32>
    %265 = arith.addf %263, %264 : vector<2x8xf32>
    %cst_80 = arith.constant 3.500000e+00 : f32
    %266 = vector.broadcast %cst_80 : f32 to vector<2x8xf32>
    %267 = arith.mulf %266, %265 : vector<2x8xf32>
    %cst_81 = arith.constant -5.000000e+00 : f32
    %268 = vector.broadcast %cst_81 : f32 to vector<2x8xf32>
    %269 = arith.addf %268, %267 : vector<2x8xf32>
    %270 = math.exp %269 : vector<2x8xf32>
    %271 = tpu.concatenate %190, %270 in 1 : vector<2x8xf32>, vector<2x8xf32> -> vector<2x16xf32>
    %c0_82 = arith.constant 0 : index
    %c0_83 = arith.constant 0 : index
    %272 = vector.load %arg7[%c0_82, %c0_83] : memref<2x16xf32, #tpu.memory_space<vmem>>, vector<2x16xf32>
    tpu.vector_store %arg7[%c0_82, %c0_83], %271 {strides = array<i32>} : memref<2x16xf32, #tpu.memory_space<vmem>>, vector<2x16xf32>,
    return
  }
  func.func @transform_0(%arg0: i32) -> (i32, i32) {
    %c0_i32 = arith.constant 0 : i32
    %c0_i32_0 = arith.constant 0 : i32
    return %arg0, %c0_i32 : i32, i32
  }
  func.func @transform_1(%arg0: i32) -> (i32, i32) {
    %c0_i32 = arith.constant 0 : i32
    %c0_i32_0 = arith.constant 0 : i32
    %c0_i32_1 = arith.constant 0 : i32
    return %c0_i32, %c0_i32_0 : i32, i32
  }
  func.func @transform_2(%arg0: i32) -> (i32, i32) {
    %c0_i32 = arith.constant 0 : i32
    %c0_i32_0 = arith.constant 0 : i32
    %c0_i32_1 = arith.constant 0 : i32
    return %c0_i32, %c0_i32_0 : i32, i32
  }
  func.func @transform_3(%arg0: i32) -> (i32, i32) {
    %c0_i32 = arith.constant 0 : i32
    %c0_i32_0 = arith.constant 0 : i32
    %c0_i32_1 = arith.constant 0 : i32
    return %c0_i32, %c0_i32_0 : i32, i32
  }
  func.func @transform_4(%arg0: i32) -> (i32, i32) {
    %c0_i32 = arith.constant 0 : i32
    %c0_i32_0 = arith.constant 0 : i32
    %c0_i32_1 = arith.constant 0 : i32
    return %c0_i32, %c0_i32_0 : i32, i32
  }
  func.func @transform_5(%arg0: i32) -> (i32, i32) {
    %c0_i32 = arith.constant 0 : i32
    %c0_i32_0 = arith.constant 0 : i32
    %c0_i32_1 = arith.constant 0 : i32
    return %c0_i32, %c0_i32_0 : i32, i32
  }
  func.func @transform_6(%arg0: i32) -> (i32, i32) {
    %c0_i32 = arith.constant 0 : i32
    %c0_i32_0 = arith.constant 0 : i32
    return %arg0, %c0_i32 : i32, i32
  }
}

</mosaic_0001>

<llo_original>
// kernel: tpu_custom_call.1
$region0: #{tpu_custom_call.1}
  #allocation0 [shape = 'u32[]', space=smem, size = 0x4, offset = 0x4, fixed_abs, tag = 'smem constant byte address 0x4 - core index']
  #allocation1 [shape = 'u32[144,128]{1,0:T(1,128)}', space=vmem, size = 0x12000, scoped, tag = 'internal scratch']
  %s0 = inlined_call_operand.vmem [shape: f32[2,24], index: 0, kind: input, shape index: {}]
  %s1 = inlined_call_operand.vmem [shape: f32[24,48], index: 1, kind: input, shape index: {}]
  %s2 = inlined_call_operand.vmem [shape: f32[2,24], index: 2, kind: input, shape index: {}]
  %s3 = inlined_call_operand.vmem [shape: f32[8,24], index: 3, kind: input, shape index: {}]
  %s4 = inlined_call_operand.vmem [shape: f32[24,16], index: 4, kind: input, shape index: {}]
  %s5 = inlined_call_operand.vmem [shape: f32[2,8], index: 5, kind: input, shape index: {}]
  %s6 = inlined_call_operand.hbm [shape: f32[2,16], index: 6, kind: output, shape index: {}]
  %s7 = sld [smem:[#allocation0]]
  $region34: #{tpu_custom_call.1} parent=0
    _
  %s9 = ssub.s32 1, %s7
  %s10 = scalar_select 0, %s9, %s7
  $region1: #{tpu_custom_call.1} parent=0
    #allocation2 [shape = 'u8[1024]{0}', space=vmem, size = 0x400, scoped, tag = 'output window, operand 0, single buffered']
    #allocation3 [shape = 's32[1]{0}', space=sflag, size = 0x4, scoped, tag = 'scoped memory for tpu_custom_call.1']
    %11 = vsyncpa [#allocation3], 0
    // Predicated region
    $region2: #{tpu_custom_call.1} parent=1 // pred_check
      _
    $region3: #{tpu_custom_call.1} parent=1 // pred_check_branch
      %13 = sbr.rel (0) target = $region5
    $region4: #{tpu_custom_call.1} parent=1 // pred_region
      _
    $region5: #{tpu_custom_call.1} parent=1 // pred_fallthru
      _
    // Predicated region
    $region6: #{tpu_custom_call.1} parent=1 // pred_check
      _
    $region7: #{tpu_custom_call.1} parent=1 // pred_check_branch
      %15 = sbr.rel (0) target = $region9
    $region8: #{tpu_custom_call.1} parent=1 // pred_region
      _
    $region9: #{tpu_custom_call.1} parent=1 // pred_fallthru
      _
    // Predicated region
    $region10: #{tpu_custom_call.1} parent=1 // pred_check
      _
    $region11: #{tpu_custom_call.1} parent=1 // pred_check_branch
      %17 = sbr.rel (0) target = $region13
    $region12: #{tpu_custom_call.1} parent=1 // pred_region
      _
    $region13: #{tpu_custom_call.1} parent=1 // pred_fallthru
      _
    // Predicated region
    $region14: #{tpu_custom_call.1} parent=1 // pred_check
      _
    $region15: #{tpu_custom_call.1} parent=1 // pred_check_branch
      %19 = sbr.rel (0) target = $region17
    $region16: #{tpu_custom_call.1} parent=1 // pred_region
      _
    $region17: #{tpu_custom_call.1} parent=1 // pred_fallthru
      _
    // Predicated region
    $region18: #{tpu_custom_call.1} parent=1 // pred_check
      _
    $region19: #{tpu_custom_call.1} parent=1 // pred_check_branch
      %21 = sbr.rel (0) target = $region21
    $region20: #{tpu_custom_call.1} parent=1 // pred_region
      _
    $region21: #{tpu_custom_call.1} parent=1 // pred_fallthru
      _
    // Predicated region
    $region22: #{tpu_custom_call.1} parent=1 // pred_check
      _
    $region23: #{tpu_custom_call.1} parent=1 // pred_check_branch
      %23 = sbr.rel (0) target = $region25
    $region24: #{tpu_custom_call.1} parent=1 // pred_region
      _
    $region25: #{tpu_custom_call.1} parent=1 // pred_fallthru
      _
    %v24 = vld [vmem:[%s0] sm:$0x3]
    %v25 = vld [vmem:[%s1] sm:$0xff]
    %v26 = vld [vmem:[%s1 + $0x8] sm:$0xff]
    %v27 = vld [vmem:[%s1 + $0x10] sm:$0xff]
    %v28 = vld [vmem:[%s2] sm:$0x3]
    %v29 = vld [vmem:[%s3] sm:$0xff]
    %v30 = vld [vmem:[%s4] sm:$0xff]
    %v31 = vld [vmem:[%s4 + $0x8] sm:$0xff]
    %v32 = vld [vmem:[%s4 + $0x10] sm:$0xff]
    %v33 = vld [vmem:[%s5] sm:$0x3]
    %v34 = vlaneseq
    %v35 = vshrl.u32 %v34, 7
    %v36 = vadd.s32 %v35, 8
    %v37 = vadd.s32 %v35, 16
    %v38 = vlaneseq
    %v39 = vand.u32 %v38, 127
    %v40 = vmul.u32 %v39, 6
    %vm41 = vcmp.ge.s32.totalorder %v35, %v40
    %vm42 = vcmp.ge.s32.totalorder %v36, %v40
    %vm43 = vcmp.ge.s32.totalorder %v37, %v40
    %v44 = vadd.s32 %v40, 6
    %vm45 = vcmp.lt.s32.totalorder %v35, %v44
    %vm46 = vcmp.lt.s32.totalorder %v36, %v44
    %vm47 = vcmp.lt.s32.totalorder %v37, %v44
    %vm48 = vmand %vm41, %vm45
    %vm49 = vmand %vm42, %vm46
    %vm50 = vmand %vm43, %vm47
    %v51 = vsel %vm48, 1, 0
    %v52 = vsel %vm49, 1, 0
    %v53 = vsel %vm50, 1, 0
    %v54 = vcvt.s32.f32 %v51
    %v55 = vcvt.s32.f32 %v52
    %v56 = vcvt.s32.f32 %v53
    %v57 = vmul.u32 %v35, 6
    %vm58 = vcmp.ge.s32.totalorder %v39, %v57
    %v59 = vadd.s32 %v57, 6
    %vm60 = vcmp.lt.s32.totalorder %v39, %v59
    %vm61 = vmand %vm58, %vm60
    %v62 = vsel %vm61, 1, 0
    %v63 = vcvt.s32.f32 %v62
    %vm64 = vcmp.ge.s32.totalorder %v35, 0
    %vm65 = vcmp.ge.s32.totalorder %v36, 0
    %vm66 = vcmp.ge.s32.totalorder %v37, 0
    %vm67 = vcmp.lt.s32.totalorder %v35, 6
    %vm68 = vcmp.lt.s32.totalorder %v36, 6
    %vm69 = vcmp.lt.s32.totalorder %v37, 6
    %vm70 = vmand %vm64, %vm67
    %vm71 = vmand %vm65, %vm68
    %vm72 = vmand %vm66, %vm69
    %v73 = vsub.s32 %v39, %v35
    %v74 = vsub.s32 %v39, %v36
    %v75 = vsub.s32 %v39, %v37
    %vm76 = vcmp.eq.s32.totalorder %v73, 0
    %vm77 = vcmp.eq.s32.totalorder %v74, 0
    %vm78 = vcmp.eq.s32.totalorder %v75, 0
    %vm79 = vcmp.eq.s32.totalorder %v73, 6
    %vm80 = vcmp.eq.s32.totalorder %v74, 6
    %vm81 = vcmp.eq.s32.totalorder %v75, 6
    %vm82 = vmor %vm76, %vm79
    %vm83 = vmor %vm77, %vm80
    %vm84 = vmor %vm78, %vm81
    %vm85 = vcmp.eq.s32.totalorder %v73, 12
    %vm86 = vcmp.eq.s32.totalorder %v74, 12
    %vm87 = vcmp.eq.s32.totalorder %v75, 12
    %vm88 = vmor %vm82, %vm85
    %vm89 = vmor %vm83, %vm86
    %vm90 = vmor %vm84, %vm87
    %vm91 = vcmp.eq.s32.totalorder %v73, 18
    %vm92 = vcmp.eq.s32.totalorder %v74, 18
    %vm93 = vcmp.eq.s32.totalorder %v75, 18
    %vm94 = vmor %vm88, %vm91
    %vm95 = vmor %vm89, %vm92
    %vm96 = vmor %vm90, %vm93
    %vm97 = vmand %vm70, %vm94
    %vm98 = vmand %vm71, %vm95
    %vm99 = vmand %vm72, %vm96
    %v100 = vsel %vm97, 1, 0
    %v101 = vsel %vm98, 1, 0
    %v102 = vsel %vm99, 1, 0
    %v103 = vcvt.s32.f32 %v100
    %v104 = vcvt.s32.f32 %v101
    %v105 = vcvt.s32.f32 %v102
    %vm106 = vcmp.ge.s32.totalorder %v35, 6
    %vm107 = vcmp.ge.s32.totalorder %v36, 6
    %vm108 = vcmp.ge.s32.totalorder %v37, 6
    %vm109 = vcmp.lt.s32.totalorder %v35, 12
    %vm110 = vcmp.lt.s32.totalorder %v36, 12
    %vm111 = vcmp.lt.s32.totalorder %v37, 12
    %vm112 = vmand %vm106, %vm109
    %vm113 = vmand %vm107, %vm110
    %vm114 = vmand %vm108, %vm111
    %v115 = vadd.s32 %v73, 6
    %v116 = vadd.s32 %v74, 6
    %v117 = vadd.s32 %v75, 6
    %vm118 = vcmp.eq.s32.totalorder %v115, 0
    %vm119 = vcmp.eq.s32.totalorder %v116, 0
    %vm120 = vcmp.eq.s32.totalorder %v117, 0
    %vm121 = vcmp.eq.s32.totalorder %v115, 6
    %vm122 = vcmp.eq.s32.totalorder %v116, 6
    %vm123 = vcmp.eq.s32.totalorder %v117, 6
    %vm124 = vmor %vm118, %vm121
    %vm125 = vmor %vm119, %vm122
    %vm126 = vmor %vm120, %vm123
    %vm127 = vcmp.eq.s32.totalorder %v115, 12
    %vm128 = vcmp.eq.s32.totalorder %v116, 12
    %vm129 = vcmp.eq.s32.totalorder %v117, 12
    %vm130 = vmor %vm124, %vm127
    %vm131 = vmor %vm125, %vm128
    %vm132 = vmor %vm126, %vm129
    %vm133 = vcmp.eq.s32.totalorder %v115, 18
    %vm134 = vcmp.eq.s32.totalorder %v116, 18
    %vm135 = vcmp.eq.s32.totalorder %v117, 18
    %vm136 = vmor %vm130, %vm133
    %vm137 = vmor %vm131, %vm134
    %vm138 = vmor %vm132, %vm135
    %vm139 = vmand %vm112, %vm136
    %vm140 = vmand %vm113, %vm137
    %vm141 = vmand %vm114, %vm138
    %v142 = vsel %vm139, 1, 0
    %v143 = vsel %vm140, 1, 0
    %v144 = vsel %vm141, 1, 0
    %v145 = vcvt.s32.f32 %v142
    %v146 = vcvt.s32.f32 %v143
    %v147 = vcvt.s32.f32 %v144
    %vm148 = vcmp.ge.s32.totalorder %v35, 12
    %vm149 = vcmp.ge.s32.totalorder %v36, 12
    %vm150 = vcmp.ge.s32.totalorder %v37, 12
    %vm151 = vcmp.lt.s32.totalorder %v35, 18
    %vm152 = vcmp.lt.s32.totalorder %v36, 18
    %vm153 = vcmp.lt.s32.totalorder %v37, 18
    %vm154 = vmand %vm148, %vm151
    %vm155 = vmand %vm149, %vm152
    %vm156 = vmand %vm150, %vm153
    %v157 = vadd.s32 %v73, 12
    %v158 = vadd.s32 %v74, 12
    %v159 = vadd.s32 %v75, 12
    %vm160 = vcmp.eq.s32.totalorder %v157, 0
    %vm161 = vcmp.eq.s32.totalorder %v158, 0
    %vm162 = vcmp.eq.s32.totalorder %v159, 0
    %vm163 = vcmp.eq.s32.totalorder %v157, 6
    %vm164 = vcmp.eq.s32.totalorder %v158, 6
    %vm165 = vcmp.eq.s32.totalorder %v159, 6
    %vm166 = vmor %vm160, %vm163
    %vm167 = vmor %vm161, %vm164
    %vm168 = vmor %vm162, %vm165
    %vm169 = vcmp.eq.s32.totalorder %v157, 12
    %vm170 = vcmp.eq.s32.totalorder %v158, 12
    %vm171 = vcmp.eq.s32.totalorder %v159, 12
    %vm172 = vmor %vm166, %vm169
    %vm173 = vmor %vm167, %vm170
    %vm174 = vmor %vm168, %vm171
    %vm175 = vcmp.eq.s32.totalorder %v157, 18
    %vm176 = vcmp.eq.s32.totalorder %v158, 18
    %vm177 = vcmp.eq.s32.totalorder %v159, 18
    %vm178 = vmor %vm172, %vm175
    %vm179 = vmor %vm173, %vm176
    %vm180 = vmor %vm174, %vm177
    %vm181 = vmand %vm154, %vm178
    %vm182 = vmand %vm155, %vm179
    %vm183 = vmand %vm156, %vm180
    %v184 = vsel %vm181, 1, 0
    %v185 = vsel %vm182, 1, 0
    %v186 = vsel %vm183, 1, 0
    %v187 = vcvt.s32.f32 %v184
    %v188 = vcvt.s32.f32 %v185
    %v189 = vcvt.s32.f32 %v186
    %vm190 = vcmp.ge.s32.totalorder %v35, 18
    %vm191 = vcmp.ge.s32.totalorder %v36, 18
    %vm192 = vcmp.ge.s32.totalorder %v37, 18
    %vm193 = vcmp.lt.s32.totalorder %v35, 24
    %vm194 = vcmp.lt.s32.totalorder %v36, 24
    %vm195 = vcmp.lt.s32.totalorder %v37, 24
    %vm196 = vmand %vm190, %vm193
    %vm197 = vmand %vm191, %vm194
    %vm198 = vmand %vm192, %vm195
    %v199 = vadd.s32 %v73, 18
    %v200 = vadd.s32 %v74, 18
    %v201 = vadd.s32 %v75, 18
    %vm202 = vcmp.eq.s32.totalorder %v199, 0
    %vm203 = vcmp.eq.s32.totalorder %v200, 0
    %vm204 = vcmp.eq.s32.totalorder %v201, 0
    %vm205 = vcmp.eq.s32.totalorder %v199, 6
    %vm206 = vcmp.eq.s32.totalorder %v200, 6
    %vm207 = vcmp.eq.s32.totalorder %v201, 6
    %vm208 = vmor %vm202, %vm205
    %vm209 = vmor %vm203, %vm206
    %vm210 = vmor %vm204, %vm207
    %vm211 = vcmp.eq.s32.totalorder %v199, 12
    %vm212 = vcmp.eq.s32.totalorder %v200, 12
    %vm213 = vcmp.eq.s32.totalorder %v201, 12
    %vm214 = vmor %vm208, %vm211
    %vm215 = vmor %vm209, %vm212
    %vm216 = vmor %vm210, %vm213
    %vm217 = vcmp.eq.s32.totalorder %v199, 18
    %vm218 = vcmp.eq.s32.totalorder %v200, 18
    %vm219 = vcmp.eq.s32.totalorder %v201, 18
    %vm220 = vmor %vm214, %vm217
    %vm221 = vmor %vm215, %vm218
    %vm222 = vmor %vm216, %vm219
    %vm223 = vmand %vm196, %vm220
    %vm224 = vmand %vm197, %vm221
    %vm225 = vmand %vm198, %vm222
    %v226 = vsel %vm223, 1, 0
    %v227 = vsel %vm224, 1, 0
    %v228 = vsel %vm225, 1, 0
    %v229 = vcvt.s32.f32 %v226
    %v230 = vcvt.s32.f32 %v227
    %v231 = vcvt.s32.f32 %v228
    %vm232 = vcmask 195584
    %v234 = vsel %vm232, %v24, 0
    %236 = vmatprep.subr.mxu0 0.0
    %237 = vmatpush1.msra.mxu0 %v25
    %238 = vmatprep.subr.mxu0 0.0
    %239 = vmatpush1.msra.mxu0 %v26
    %240 = vmatprep.subr.mxu0 0.0
    %241 = vmatpush1.msra.mxu0 %v27
    %242 = vmatprep.subr.mxu0 0.0
    %243 = vmatpush1.msra.mxu0 0.0
    %244 = vmatprep.subr.mxu0 0.0
    %245 = vmatpush1.msra.mxu0 0.0
    %246 = vmatprep.subr.mxu0 0.0
    %247 = vmatpush1.msra.mxu0 0.0
    %248 = vmatprep.subr.mxu0 0.0
    %249 = vmatpush1.msra.mxu0 0.0
    %250 = vmatprep.subr.mxu0 0.0
    %251 = vmatpush1.msra.mxu0 0.0
    %252 = vmatprep.subr.mxu0 0.0
    %253 = vmatpush1.msra.mxu0 0.0
    %254 = vmatprep.subr.mxu0 0.0
    %255 = vmatpush1.msra.mxu0 0.0
    %256 = vmatprep.subr.mxu0 0.0
    %257 = vmatpush1.msra.mxu0 0.0
    %258 = vmatprep.subr.mxu0 0.0
    %259 = vmatpush1.msra.mxu0 0.0
    %260 = vmatprep.subr.mxu0 0.0
    %261 = vmatpush1.msra.mxu0 0.0
    %262 = vmatprep.subr.mxu0 0.0
    %263 = vmatpush1.msra.mxu0 0.0
    %264 = vmatprep.subr.mxu0 0.0
    %265 = vmatpush1.msra.mxu0 0.0
    %266 = vmatprep.subr.mxu0 0.0
    %267 = vmatpush1.msra.mxu0 0.0
    %268 = vmatprep.subr.mxu0 0.0
    %269 = vmatpush1.msra.mxu0 0.0
    %270 = vmatprep.subr.mxu0 0.0
    %271 = vmatpush1.msra.mxu0 0.0
    %272 = vmatprep.subr.mxu0 0.0
    %273 = vmatpush1.msra.mxu0 0.0
    %274 = vmatprep.subr.mxu0 0.0
    %275 = vmatpush1.msra.mxu0 0.0
    %276 = vmatprep.subr.mxu0 0.0
    %277 = vmatpush1.msra.mxu0 0.0
    %278 = vmatprep.subr.mxu0 0.0
    %279 = vmatpush1.msra.mxu0 0.0
    %280 = vmatprep.subr.mxu0 0.0
    %281 = vmatpush1.msra.mxu0 0.0
    %282 = vmatprep.subr.mxu0 0.0
    %283 = vmatpush1.msra.mxu0 0.0
    %284 = vmatprep.subr.mxu0 0.0
    %285 = vmatpush1.msra.mxu0 0.0
    %286 = vmatprep.subr.mxu0 0.0
    %287 = vmatpush1.msra.mxu0 0.0
    %288 = vmatprep.subr.mxu0 0.0
    %289 = vmatpush1.msra.mxu0 0.0
    %290 = vmatprep.subr.mxu0 0.0
    %291 = vmatpush1.msra.mxu0 0.0
    %292 = vmatprep.subr.mxu0 0.0
    %293 = vmatpush1.msra.mxu0 0.0
    %294 = vmatprep.subr.mxu0 0.0
    %295 = vmatpush1.msra.mxu0 0.0
    %296 = vmatprep.subr.mxu0 0.0
    %297 = vmatpush1.msra.mxu0 0.0
    %298 = vmatprep.subr.mxu0 0.0
    %299 = vmatpush1.msra.mxu0 0.0
    %300 = vmatprep.mubr.f32.mxu0 0.0
    %301 = vmatmul.mubr.f32.gmra.mrb[0].mxu0 %v234
    %v302 = vpop.f32.mrb[0].mxu0
    %v303 = vadd.f32 0.0, %v302
    %v304 = vpop.f32.mrb[0].mxu0
    %305 = vdwg.mxu0
    %v306 = vlaneseq
    %v307 = vshrl.u32 %v306, 7
    %v308 = vsub.s32 0, %v307
    %v309 = vrot.slane %v28, %v308
    %v310 = vadd.f32 %v303, %v309
    %v311 = vmul.f32 %v310, 0.5
    %v312 = vtanh.pop %v311
    %v313 = vadd.f32 %v312, 1.0
    %v314 = vmul.f32 %v313, 0.5
    %v315 = vmul.f32 %v310, %v314
    %v317 = vsel %vm232, %v315, 0
    %319 = vmatprep.subr.mxu0 0.0
    %320 = vmatpush1.msra.mxu0 %v103
    %321 = vmatprep.subr.mxu0 0.0
    %322 = vmatpush1.msra.mxu0 %v104
    %323 = vmatprep.subr.mxu0 0.0
    %324 = vmatpush1.msra.mxu0 %v105
    %325 = vmatprep.subr.mxu0 0.0
    %326 = vmatpush1.msra.mxu0 0.0
    %327 = vmatprep.subr.mxu0 0.0
    %328 = vmatpush1.msra.mxu0 0.0
    %329 = vmatprep.subr.mxu0 0.0
    %330 = vmatpush1.msra.mxu0 0.0
    %331 = vmatprep.subr.mxu0 0.0
    %332 = vmatpush1.msra.mxu0 0.0
    %333 = vmatprep.subr.mxu0 0.0
    %334 = vmatpush1.msra.mxu0 0.0
    %335 = vmatprep.subr.mxu0 0.0
    %336 = vmatpush1.msra.mxu0 0.0
    %337 = vmatprep.subr.mxu0 0.0
    %338 = vmatpush1.msra.mxu0 0.0
    %339 = vmatprep.subr.mxu0 0.0
    %340 = vmatpush1.msra.mxu0 0.0
    %341 = vmatprep.subr.mxu0 0.0
    %342 = vmatpush1.msra.mxu0 0.0
    %343 = vmatprep.subr.mxu0 0.0
    %344 = vmatpush1.msra.mxu0 0.0
    %345 = vmatprep.subr.mxu0 0.0
    %346 = vmatpush1.msra.mxu0 0.0
    %347 = vmatprep.subr.mxu0 0.0
    %348 = vmatpush1.msra.mxu0 0.0
    %349 = vmatprep.subr.mxu0 0.0
    %350 = vmatpush1.msra.mxu0 0.0
    %351 = vmatprep.subr.mxu0 0.0
    %352 = vmatpush1.msra.mxu0 0.0
    %353 = vmatprep.subr.mxu0 0.0
    %354 = vmatpush1.msra.mxu0 0.0
    %355 = vmatprep.subr.mxu0 0.0
    %356 = vmatpush1.msra.mxu0 0.0
    %357 = vmatprep.subr.mxu0 0.0
    %358 = vmatpush1.msra.mxu0 0.0
    %359 = vmatprep.subr.mxu0 0.0
    %360 = vmatpush1.msra.mxu0 0.0
    %361 = vmatprep.subr.mxu0 0.0
    %362 = vmatpush1.msra.mxu0 0.0
    %363 = vmatprep.subr.mxu0 0.0
    %364 = vmatpush1.msra.mxu0 0.0
    %365 = vmatprep.subr.mxu0 0.0
    %366 = vmatpush1.msra.mxu0 0.0
    %367 = vmatprep.subr.mxu0 0.0
    %368 = vmatpush1.msra.mxu0 0.0
    %369 = vmatprep.subr.mxu0 0.0
    %370 = vmatpush1.msra.mxu0 0.0
    %371 = vmatprep.subr.mxu0 0.0
    %372 = vmatpush1.msra.mxu0 0.0
    %373 = vmatprep.subr.mxu0 0.0
    %374 = vmatpush1.msra.mxu0 0.0
    %375 = vmatprep.subr.mxu0 0.0
    %376 = vmatpush1.msra.mxu0 0.0
    %377 = vmatprep.subr.mxu0 0.0
    %378 = vmatpush1.msra.mxu0 0.0
    %379 = vmatprep.subr.mxu0 0.0
    %380 = vmatpush1.msra.mxu0 0.0
    %381 = vmatprep.subr.mxu0 0.0
    %382 = vmatpush1.msra.mxu0 0.0
    %383 = vmatprep.mubr.f32.mxu0 0.0
    %384 = vmatmul.mubr.f32.gmra.mrb[0].mxu0 %v317
    %v385 = vpop.f32.mrb[0].mxu0
    %v386 = vadd.f32 0.0, %v385
    %v387 = vpop.f32.mrb[0].mxu0
    %388 = vdwg.mxu0
    %v389 = vmul.f32 %v315, %v386
    %v391 = vsel %vm232, %v389, 0
    %393 = vmatprep.subr.mxu0 0.0
    %394 = vmatpush1.msra.mxu0 %v54
    %395 = vmatprep.subr.mxu0 0.0
    %396 = vmatpush1.msra.mxu0 %v55
    %397 = vmatprep.subr.mxu0 0.0
    %398 = vmatpush1.msra.mxu0 %v56
    %399 = vmatprep.subr.mxu0 0.0
    %400 = vmatpush1.msra.mxu0 0.0
    %401 = vmatprep.subr.mxu0 0.0
    %402 = vmatpush1.msra.mxu0 0.0
    %403 = vmatprep.subr.mxu0 0.0
    %404 = vmatpush1.msra.mxu0 0.0
    %405 = vmatprep.subr.mxu0 0.0
    %406 = vmatpush1.msra.mxu0 0.0
    %407 = vmatprep.subr.mxu0 0.0
    %408 = vmatpush1.msra.mxu0 0.0
    %409 = vmatprep.subr.mxu0 0.0
    %410 = vmatpush1.msra.mxu0 0.0
    %411 = vmatprep.subr.mxu0 0.0
    %412 = vmatpush1.msra.mxu0 0.0
    %413 = vmatprep.subr.mxu0 0.0
    %414 = vmatpush1.msra.mxu0 0.0
    %415 = vmatprep.subr.mxu0 0.0
    %416 = vmatpush1.msra.mxu0 0.0
    %417 = vmatprep.subr.mxu0 0.0
    %418 = vmatpush1.msra.mxu0 0.0
    %419 = vmatprep.subr.mxu0 0.0
    %420 = vmatpush1.msra.mxu0 0.0
    %421 = vmatprep.subr.mxu0 0.0
    %422 = vmatpush1.msra.mxu0 0.0
    %423 = vmatprep.subr.mxu0 0.0
    %424 = vmatpush1.msra.mxu0 0.0
    %425 = vmatprep.subr.mxu0 0.0
    %426 = vmatpush1.msra.mxu0 0.0
    %427 = vmatprep.subr.mxu0 0.0
    %428 = vmatpush1.msra.mxu0 0.0
    %429 = vmatprep.subr.mxu0 0.0
    %430 = vmatpush1.msra.mxu0 0.0
    %431 = vmatprep.subr.mxu0 0.0
    %432 = vmatpush1.msra.mxu0 0.0
    %433 = vmatprep.subr.mxu0 0.0
    %434 = vmatpush1.msra.mxu0 0.0
    %435 = vmatprep.subr.mxu0 0.0
    %436 = vmatpush1.msra.mxu0 0.0
    %437 = vmatprep.subr.mxu0 0.0
    %438 = vmatpush1.msra.mxu0 0.0
    %439 = vmatprep.subr.mxu0 0.0
    %440 = vmatpush1.msra.mxu0 0.0
    %441 = vmatprep.subr.mxu0 0.0
    %442 = vmatpush1.msra.mxu0 0.0
    %443 = vmatprep.subr.mxu0 0.0
    %444 = vmatpush1.msra.mxu0 0.0
    %445 = vmatprep.subr.mxu0 0.0
    %446 = vmatpush1.msra.mxu0 0.0
    %447 = vmatprep.subr.mxu0 0.0
    %448 = vmatpush1.msra.mxu0 0.0
    %449 = vmatprep.subr.mxu0 0.0
    %450 = vmatpush1.msra.mxu0 0.0
    %451 = vmatprep.subr.mxu0 0.0
    %452 = vmatpush1.msra.mxu0 0.0
    %453 = vmatprep.subr.mxu0 0.0
    %454 = vmatpush1.msra.mxu0 0.0
    %455 = vmatprep.subr.mxu0 0.0
    %456 = vmatpush1.msra.mxu0 0.0
    %457 = vmatprep.mubr.f32.mxu0 0.0
    %458 = vmatmul.mubr.f32.gmra.mrb[0].mxu0 %v391
    %v459 = vpop.f32.mrb[0].mxu0
    %v460 = vadd.f32 0.0, %v459
    %v461 = vpop.f32.mrb[0].mxu0
    %462 = vdwg.mxu0
    %463 = vmatprep.subr.mxu0 0.0
    %464 = vmatpush1.msra.mxu0 %v145
    %465 = vmatprep.subr.mxu0 0.0
    %466 = vmatpush1.msra.mxu0 %v146
    %467 = vmatprep.subr.mxu0 0.0
    %468 = vmatpush1.msra.mxu0 %v147
    %469 = vmatprep.subr.mxu0 0.0
    %470 = vmatpush1.msra.mxu0 0.0
    %471 = vmatprep.subr.mxu0 0.0
    %472 = vmatpush1.msra.mxu0 0.0
    %473 = vmatprep.subr.mxu0 0.0
    %474 = vmatpush1.msra.mxu0 0.0
    %475 = vmatprep.subr.mxu0 0.0
    %476 = vmatpush1.msra.mxu0 0.0
    %477 = vmatprep.subr.mxu0 0.0
    %478 = vmatpush1.msra.mxu0 0.0
    %479 = vmatprep.subr.mxu0 0.0
    %480 = vmatpush1.msra.mxu0 0.0
    %481 = vmatprep.subr.mxu0 0.0
    %482 = vmatpush1.msra.mxu0 0.0
    %483 = vmatprep.subr.mxu0 0.0
    %484 = vmatpush1.msra.mxu0 0.0
    %485 = vmatprep.subr.mxu0 0.0
    %486 = vmatpush1.msra.mxu0 0.0
    %487 = vmatprep.subr.mxu0 0.0
    %488 = vmatpush1.msra.mxu0 0.0
    %489 = vmatprep.subr.mxu0 0.0
    %490 = vmatpush1.msra.mxu0 0.0
    %491 = vmatprep.subr.mxu0 0.0
    %492 = vmatpush1.msra.mxu0 0.0
    %493 = vmatprep.subr.mxu0 0.0
    %494 = vmatpush1.msra.mxu0 0.0
    %495 = vmatprep.subr.mxu0 0.0
    %496 = vmatpush1.msra.mxu0 0.0
    %497 = vmatprep.subr.mxu0 0.0
    %498 = vmatpush1.msra.mxu0 0.0
    %499 = vmatprep.subr.mxu0 0.0
    %500 = vmatpush1.msra.mxu0 0.0
    %501 = vmatprep.subr.mxu0 0.0
    %502 = vmatpush1.msra.mxu0 0.0
    %503 = vmatprep.subr.mxu0 0.0
    %504 = vmatpush1.msra.mxu0 0.0
    %505 = vmatprep.subr.mxu0 0.0
    %506 = vmatpush1.msra.mxu0 0.0
    %507 = vmatprep.subr.mxu0 0.0
    %508 = vmatpush1.msra.mxu0 0.0
    %509 = vmatprep.subr.mxu0 0.0
    %510 = vmatpush1.msra.mxu0 0.0
    %511 = vmatprep.subr.mxu0 0.0
    %512 = vmatpush1.msra.mxu0 0.0
    %513 = vmatprep.subr.mxu0 0.0
    %514 = vmatpush1.msra.mxu0 0.0
    %515 = vmatprep.subr.mxu0 0.0
    %516 = vmatpush1.msra.mxu0 0.0
    %517 = vmatprep.subr.mxu0 0.0
    %518 = vmatpush1.msra.mxu0 0.0
    %519 = vmatprep.subr.mxu0 0.0
    %520 = vmatpush1.msra.mxu0 0.0
    %521 = vmatprep.subr.mxu0 0.0
    %522 = vmatpush1.msra.mxu0 0.0
    %523 = vmatprep.subr.mxu0 0.0
    %524 = vmatpush1.msra.mxu0 0.0
    %525 = vmatprep.subr.mxu0 0.0
    %526 = vmatpush1.msra.mxu0 0.0
    %527 = vmatprep.mubr.f32.mxu0 0.0
    %528 = vmatmul.mubr.f32.gmra.mrb[0].mxu0 %v317
    %v529 = vpop.f32.mrb[0].mxu0
    %v530 = vadd.f32 0.0, %v529
    %v531 = vpop.f32.mrb[0].mxu0
    %532 = vdwg.mxu0
    %v533 = vmul.f32 %v315, %v530
    %v535 = vsel %vm232, %v533, 0
    %537 = vmatprep.subr.mxu0 0.0
    %538 = vmatpush1.msra.mxu0 %v54
    %539 = vmatprep.subr.mxu0 0.0
    %540 = vmatpush1.msra.mxu0 %v55
    %541 = vmatprep.subr.mxu0 0.0
    %542 = vmatpush1.msra.mxu0 %v56
    %543 = vmatprep.subr.mxu0 0.0
    %544 = vmatpush1.msra.mxu0 0.0
    %545 = vmatprep.subr.mxu0 0.0
    %546 = vmatpush1.msra.mxu0 0.0
    %547 = vmatprep.subr.mxu0 0.0
    %548 = vmatpush1.msra.mxu0 0.0
    %549 = vmatprep.subr.mxu0 0.0
    %550 = vmatpush1.msra.mxu0 0.0
    %551 = vmatprep.subr.mxu0 0.0
    %552 = vmatpush1.msra.mxu0 0.0
    %553 = vmatprep.subr.mxu0 0.0
    %554 = vmatpush1.msra.mxu0 0.0
    %555 = vmatprep.subr.mxu0 0.0
    %556 = vmatpush1.msra.mxu0 0.0
    %557 = vmatprep.subr.mxu0 0.0
    %558 = vmatpush1.msra.mxu0 0.0
    %559 = vmatprep.subr.mxu0 0.0
    %560 = vmatpush1.msra.mxu0 0.0
    %561 = vmatprep.subr.mxu0 0.0
    %562 = vmatpush1.msra.mxu0 0.0
    %563 = vmatprep.subr.mxu0 0.0
    %564 = vmatpush1.msra.mxu0 0.0
    %565 = vmatprep.subr.mxu0 0.0
    %566 = vmatpush1.msra.mxu0 0.0
    %567 = vmatprep.subr.mxu0 0.0
    %568 = vmatpush1.msra.mxu0 0.0
    %569 = vmatprep.subr.mxu0 0.0
    %570 = vmatpush1.msra.mxu0 0.0
    %571 = vmatprep.subr.mxu0 0.0
    %572 = vmatpush1.msra.mxu0 0.0
    %573 = vmatprep.subr.mxu0 0.0
    %574 = vmatpush1.msra.mxu0 0.0
    %575 = vmatprep.subr.mxu0 0.0
    %576 = vmatpush1.msra.mxu0 0.0
    %577 = vmatprep.subr.mxu0 0.0
    %578 = vmatpush1.msra.mxu0 0.0
    %579 = vmatprep.subr.mxu0 0.0
    %580 = vmatpush1.msra.mxu0 0.0
    %581 = vmatprep.subr.mxu0 0.0
    %582 = vmatpush1.msra.mxu0 0.0
    %583 = vmatprep.subr.mxu0 0.0
    %584 = vmatpush1.msra.mxu0 0.0
    %585 = vmatprep.subr.mxu0 0.0
    %586 = vmatpush1.msra.mxu0 0.0
    %587 = vmatprep.subr.mxu0 0.0
    %588 = vmatpush1.msra.mxu0 0.0
    %589 = vmatprep.subr.mxu0 0.0
    %590 = vmatpush1.msra.mxu0 0.0
    %591 = vmatprep.subr.mxu0 0.0
    %592 = vmatpush1.msra.mxu0 0.0
    %593 = vmatprep.subr.mxu0 0.0
    %594 = vmatpush1.msra.mxu0 0.0
    %595 = vmatprep.subr.mxu0 0.0
    %596 = vmatpush1.msra.mxu0 0.0
    %597 = vmatprep.subr.mxu0 0.0
    %598 = vmatpush1.msra.mxu0 0.0
    %599 = vmatprep.subr.mxu0 0.0
    %600 = vmatpush1.msra.mxu0 0.0
    %601 = vmatprep.mubr.f32.mxu0 0.0
    %602 = vmatmul.mubr.f32.gmra.mrb[0].mxu0 %v535
    %v603 = vpop.f32.mrb[0].mxu0
    %v604 = vadd.f32 0.0, %v603
    %v605 = vpop.f32.mrb[0].mxu0
    %606 = vdwg.mxu0
    %607 = vmatprep.subr.mxu0 0.0
    %608 = vmatpush1.msra.mxu0 %v187
    %609 = vmatprep.subr.mxu0 0.0
    %610 = vmatpush1.msra.mxu0 %v188
    %611 = vmatprep.subr.mxu0 0.0
    %612 = vmatpush1.msra.mxu0 %v189
    %613 = vmatprep.subr.mxu0 0.0
    %614 = vmatpush1.msra.mxu0 0.0
    %615 = vmatprep.subr.mxu0 0.0
    %616 = vmatpush1.msra.mxu0 0.0
    %617 = vmatprep.subr.mxu0 0.0
    %618 = vmatpush1.msra.mxu0 0.0
    %619 = vmatprep.subr.mxu0 0.0
    %620 = vmatpush1.msra.mxu0 0.0
    %621 = vmatprep.subr.mxu0 0.0
    %622 = vmatpush1.msra.mxu0 0.0
    %623 = vmatprep.subr.mxu0 0.0
    %624 = vmatpush1.msra.mxu0 0.0
    %625 = vmatprep.subr.mxu0 0.0
    %626 = vmatpush1.msra.mxu0 0.0
    %627 = vmatprep.subr.mxu0 0.0
    %628 = vmatpush1.msra.mxu0 0.0
    %629 = vmatprep.subr.mxu0 0.0
    %630 = vmatpush1.msra.mxu0 0.0
    %631 = vmatprep.subr.mxu0 0.0
    %632 = vmatpush1.msra.mxu0 0.0
    %633 = vmatprep.subr.mxu0 0.0
    %634 = vmatpush1.msra.mxu0 0.0
    %635 = vmatprep.subr.mxu0 0.0
    %636 = vmatpush1.msra.mxu0 0.0
    %637 = vmatprep.subr.mxu0 0.0
    %638 = vmatpush1.msra.mxu0 0.0
    %639 = vmatprep.subr.mxu0 0.0
    %640 = vmatpush1.msra.mxu0 0.0
    %641 = vmatprep.subr.mxu0 0.0
    %642 = vmatpush1.msra.mxu0 0.0
    %643 = vmatprep.subr.mxu0 0.0
    %644 = vmatpush1.msra.mxu0 0.0
    %645 = vmatprep.subr.mxu0 0.0
    %646 = vmatpush1.msra.mxu0 0.0
    %647 = vmatprep.subr.mxu0 0.0
    %648 = vmatpush1.msra.mxu0 0.0
    %649 = vmatprep.subr.mxu0 0.0
    %650 = vmatpush1.msra.mxu0 0.0
    %651 = vmatprep.subr.mxu0 0.0
    %652 = vmatpush1.msra.mxu0 0.0
    %653 = vmatprep.subr.mxu0 0.0
    %654 = vmatpush1.msra.mxu0 0.0
    %655 = vmatprep.subr.mxu0 0.0
    %656 = vmatpush1.msra.mxu0 0.0
    %657 = vmatprep.subr.mxu0 0.0
    %658 = vmatpush1.msra.mxu0 0.0
    %659 = vmatprep.subr.mxu0 0.0
    %660 = vmatpush1.msra.mxu0 0.0
    %661 = vmatprep.subr.mxu0 0.0
    %662 = vmatpush1.msra.mxu0 0.0
    %663 = vmatprep.subr.mxu0 0.0
    %664 = vmatpush1.msra.mxu0 0.0
    %665 = vmatprep.subr.mxu0 0.0
    %666 = vmatpush1.msra.mxu0 0.0
    %667 = vmatprep.subr.mxu0 0.0
    %668 = vmatpush1.msra.mxu0 0.0
    %669 = vmatprep.subr.mxu0 0.0
    %670 = vmatpush1.msra.mxu0 0.0
    %671 = vmatprep.mubr.f32.mxu0 0.0
    %672 = vmatmul.mubr.f32.gmra.mrb[0].mxu0 %v317
    %v673 = vpop.f32.mrb[0].mxu0
    %v674 = vadd.f32 0.0, %v673
    %v675 = vpop.f32.mrb[0].mxu0
    %676 = vdwg.mxu0
    %v677 = vmul.f32 %v315, %v674
    %v679 = vsel %vm232, %v677, 0
    %681 = vmatprep.subr.mxu0 0.0
    %682 = vmatpush1.msra.mxu0 %v54
    %683 = vmatprep.subr.mxu0 0.0
    %684 = vmatpush1.msra.mxu0 %v55
    %685 = vmatprep.subr.mxu0 0.0
    %686 = vmatpush1.msra.mxu0 %v56
    %687 = vmatprep.subr.mxu0 0.0
    %688 = vmatpush1.msra.mxu0 0.0
    %689 = vmatprep.subr.mxu0 0.0
    %690 = vmatpush1.msra.mxu0 0.0
    %691 = vmatprep.subr.mxu0 0.0
    %692 = vmatpush1.msra.mxu0 0.0
    %693 = vmatprep.subr.mxu0 0.0
    %694 = vmatpush1.msra.mxu0 0.0
    %695 = vmatprep.subr.mxu0 0.0
    %696 = vmatpush1.msra.mxu0 0.0
    %697 = vmatprep.subr.mxu0 0.0
    %698 = vmatpush1.msra.mxu0 0.0
    %699 = vmatprep.subr.mxu0 0.0
    %700 = vmatpush1.msra.mxu0 0.0
    %701 = vmatprep.subr.mxu0 0.0
    %702 = vmatpush1.msra.mxu0 0.0
    %703 = vmatprep.subr.mxu0 0.0
    %704 = vmatpush1.msra.mxu0 0.0
    %705 = vmatprep.subr.mxu0 0.0
    %706 = vmatpush1.msra.mxu0 0.0
    %707 = vmatprep.subr.mxu0 0.0
    %708 = vmatpush1.msra.mxu0 0.0
    %709 = vmatprep.subr.mxu0 0.0
    %710 = vmatpush1.msra.mxu0 0.0
    %711 = vmatprep.subr.mxu0 0.0
    %712 = vmatpush1.msra.mxu0 0.0
    %713 = vmatprep.subr.mxu0 0.0
    %714 = vmatpush1.msra.mxu0 0.0
    %715 = vmatprep.subr.mxu0 0.0
    %716 = vmatpush1.msra.mxu0 0.0
    %717 = vmatprep.subr.mxu0 0.0
    %718 = vmatpush1.msra.mxu0 0.0
    %719 = vmatprep.subr.mxu0 0.0
    %720 = vmatpush1.msra.mxu0 0.0
    %721 = vmatprep.subr.mxu0 0.0
    %722 = vmatpush1.msra.mxu0 0.0
    %723 = vmatprep.subr.mxu0 0.0
    %724 = vmatpush1.msra.mxu0 0.0
    %725 = vmatprep.subr.mxu0 0.0
    %726 = vmatpush1.msra.mxu0 0.0
    %727 = vmatprep.subr.mxu0 0.0
    %728 = vmatpush1.msra.mxu0 0.0
    %729 = vmatprep.subr.mxu0 0.0
    %730 = vmatpush1.msra.mxu0 0.0
    %731 = vmatprep.subr.mxu0 0.0
    %732 = vmatpush1.msra.mxu0 0.0
    %733 = vmatprep.subr.mxu0 0.0
    %734 = vmatpush1.msra.mxu0 0.0
    %735 = vmatprep.subr.mxu0 0.0
    %736 = vmatpush1.msra.mxu0 0.0
    %737 = vmatprep.subr.mxu0 0.0
    %738 = vmatpush1.msra.mxu0 0.0
    %739 = vmatprep.subr.mxu0 0.0
    %740 = vmatpush1.msra.mxu0 0.0
    %741 = vmatprep.subr.mxu0 0.0
    %742 = vmatpush1.msra.mxu0 0.0
    %743 = vmatprep.subr.mxu0 0.0
    %744 = vmatpush1.msra.mxu0 0.0
    %745 = vmatprep.mubr.f32.mxu0 0.0
    %746 = vmatmul.mubr.f32.gmra.mrb[0].mxu0 %v679
    %v747 = vpop.f32.mrb[0].mxu0
    %v748 = vadd.f32 0.0, %v747
    %v749 = vpop.f32.mrb[0].mxu0
    %750 = vdwg.mxu0
    %751 = vmatprep.subr.mxu0 0.0
    %752 = vmatpush1.msra.mxu0 %v229
    %753 = vmatprep.subr.mxu0 0.0
    %754 = vmatpush1.msra.mxu0 %v230
    %755 = vmatprep.subr.mxu0 0.0
    %756 = vmatpush1.msra.mxu0 %v231
    %757 = vmatprep.subr.mxu0 0.0
    %758 = vmatpush1.msra.mxu0 0.0
    %759 = vmatprep.subr.mxu0 0.0
    %760 = vmatpush1.msra.mxu0 0.0
    %761 = vmatprep.subr.mxu0 0.0
    %762 = vmatpush1.msra.mxu0 0.0
    %763 = vmatprep.subr.mxu0 0.0
    %764 = vmatpush1.msra.mxu0 0.0
    %765 = vmatprep.subr.mxu0 0.0
    %766 = vmatpush1.msra.mxu0 0.0
    %767 = vmatprep.subr.mxu0 0.0
    %768 = vmatpush1.msra.mxu0 0.0
    %769 = vmatprep.subr.mxu0 0.0
    %770 = vmatpush1.msra.mxu0 0.0
    %771 = vmatprep.subr.mxu0 0.0
    %772 = vmatpush1.msra.mxu0 0.0
    %773 = vmatprep.subr.mxu0 0.0
    %774 = vmatpush1.msra.mxu0 0.0
    %775 = vmatprep.subr.mxu0 0.0
    %776 = vmatpush1.msra.mxu0 0.0
    %777 = vmatprep.subr.mxu0 0.0
    %778 = vmatpush1.msra.mxu0 0.0
    %779 = vmatprep.subr.mxu0 0.0
    %780 = vmatpush1.msra.mxu0 0.0
    %781 = vmatprep.subr.mxu0 0.0
    %782 = vmatpush1.msra.mxu0 0.0
    %783 = vmatprep.subr.mxu0 0.0
    %784 = vmatpush1.msra.mxu0 0.0
    %785 = vmatprep.subr.mxu0 0.0
    %786 = vmatpush1.msra.mxu0 0.0
    %787 = vmatprep.subr.mxu0 0.0
    %788 = vmatpush1.msra.mxu0 0.0
    %789 = vmatprep.subr.mxu0 0.0
    %790 = vmatpush1.msra.mxu0 0.0
    %791 = vmatprep.subr.mxu0 0.0
    %792 = vmatpush1.msra.mxu0 0.0
    %793 = vmatprep.subr.mxu0 0.0
    %794 = vmatpush1.msra.mxu0 0.0
    %795 = vmatprep.subr.mxu0 0.0
    %796 = vmatpush1.msra.mxu0 0.0
    %797 = vmatprep.subr.mxu0 0.0
    %798 = vmatpush1.msra.mxu0 0.0
    %799 = vmatprep.subr.mxu0 0.0
    %800 = vmatpush1.msra.mxu0 0.0
    %801 = vmatprep.subr.mxu0 0.0
    %802 = vmatpush1.msra.mxu0 0.0
    %803 = vmatprep.subr.mxu0 0.0
    %804 = vmatpush1.msra.mxu0 0.0
    %805 = vmatprep.subr.mxu0 0.0
    %806 = vmatpush1.msra.mxu0 0.0
    %807 = vmatprep.subr.mxu0 0.0
    %808 = vmatpush1.msra.mxu0 0.0
    %809 = vmatprep.subr.mxu0 0.0
    %810 = vmatpush1.msra.mxu0 0.0
    %811 = vmatprep.subr.mxu0 0.0
    %812 = vmatpush1.msra.mxu0 0.0
    %813 = vmatprep.subr.mxu0 0.0
    %814 = vmatpush1.msra.mxu0 0.0
    %815 = vmatprep.mubr.f32.mxu0 0.0
    %816 = vmatmul.mubr.f32.gmra.mrb[0].mxu0 %v317
    %v817 = vpop.f32.mrb[0].mxu0
    %v818 = vadd.f32 0.0, %v817
    %v819 = vpop.f32.mrb[0].mxu0
    %820 = vdwg.mxu0
    %v821 = vmul.f32 %v315, %v818
    %v823 = vsel %vm232, %v821, 0
    %825 = vmatprep.subr.mxu0 0.0
    %826 = vmatpush1.msra.mxu0 %v54
    %827 = vmatprep.subr.mxu0 0.0
    %828 = vmatpush1.msra.mxu0 %v55
    %829 = vmatprep.subr.mxu0 0.0
    %830 = vmatpush1.msra.mxu0 %v56
    %831 = vmatprep.subr.mxu0 0.0
    %832 = vmatpush1.msra.mxu0 0.0
    %833 = vmatprep.subr.mxu0 0.0
    %834 = vmatpush1.msra.mxu0 0.0
    %835 = vmatprep.subr.mxu0 0.0
    %836 = vmatpush1.msra.mxu0 0.0
    %837 = vmatprep.subr.mxu0 0.0
    %838 = vmatpush1.msra.mxu0 0.0
    %839 = vmatprep.subr.mxu0 0.0
    %840 = vmatpush1.msra.mxu0 0.0
    %841 = vmatprep.subr.mxu0 0.0
    %842 = vmatpush1.msra.mxu0 0.0
    %843 = vmatprep.subr.mxu0 0.0
    %844 = vmatpush1.msra.mxu0 0.0
    %845 = vmatprep.subr.mxu0 0.0
    %846 = vmatpush1.msra.mxu0 0.0
    %847 = vmatprep.subr.mxu0 0.0
    %848 = vmatpush1.msra.mxu0 0.0
    %849 = vmatprep.subr.mxu0 0.0
    %850 = vmatpush1.msra.mxu0 0.0
    %851 = vmatprep.subr.mxu0 0.0
    %852 = vmatpush1.msra.mxu0 0.0
    %853 = vmatprep.subr.mxu0 0.0
    %854 = vmatpush1.msra.mxu0 0.0
    %855 = vmatprep.subr.mxu0 0.0
    %856 = vmatpush1.msra.mxu0 0.0
    %857 = vmatprep.subr.mxu0 0.0
    %858 = vmatpush1.msra.mxu0 0.0
    %859 = vmatprep.subr.mxu0 0.0
    %860 = vmatpush1.msra.mxu0 0.0
    %861 = vmatprep.subr.mxu0 0.0
    %862 = vmatpush1.msra.mxu0 0.0
    %863 = vmatprep.subr.mxu0 0.0
    %864 = vmatpush1.msra.mxu0 0.0
    %865 = vmatprep.subr.mxu0 0.0
    %866 = vmatpush1.msra.mxu0 0.0
    %867 = vmatprep.subr.mxu0 0.0
    %868 = vmatpush1.msra.mxu0 0.0
    %869 = vmatprep.subr.mxu0 0.0
    %870 = vmatpush1.msra.mxu0 0.0
    %871 = vmatprep.subr.mxu0 0.0
    %872 = vmatpush1.msra.mxu0 0.0
    %873 = vmatprep.subr.mxu0 0.0
    %874 = vmatpush1.msra.mxu0 0.0
    %875 = vmatprep.subr.mxu0 0.0
    %876 = vmatpush1.msra.mxu0 0.0
    %877 = vmatprep.subr.mxu0 0.0
    %878 = vmatpush1.msra.mxu0 0.0
    %879 = vmatprep.subr.mxu0 0.0
    %880 = vmatpush1.msra.mxu0 0.0
    %881 = vmatprep.subr.mxu0 0.0
    %882 = vmatpush1.msra.mxu0 0.0
    %883 = vmatprep.subr.mxu0 0.0
    %884 = vmatpush1.msra.mxu0 0.0
    %885 = vmatprep.subr.mxu0 0.0
    %886 = vmatpush1.msra.mxu0 0.0
    %887 = vmatprep.subr.mxu0 0.0
    %888 = vmatpush1.msra.mxu0 0.0
    %889 = vmatprep.mubr.f32.mxu0 0.0
    %890 = vmatmul.mubr.f32.gmra.mrb[0].mxu0 %v823
    %v891 = vpop.f32.mrb[0].mxu0
    %v892 = vadd.f32 0.0, %v891
    %v893 = vpop.f32.mrb[0].mxu0
    %894 = vdwg.mxu0
    %v895 = vmax.f32 %v460, %v604
    %v896 = vmax.f32 %v895, %v748
    %v897 = vmax.f32 %v896, %v892
    %v898 = vsub.f32 %v460, %v897
    %v899 = vmul.f32 %v898, 1.442695
    %v900 = vpow.pop %v899
    %v901 = vsub.f32 %v604, %v897
    %v902 = vmul.f32 %v901, 1.442695
    %v903 = vpow.pop %v902
    %v904 = vsub.f32 %v748, %v897
    %v905 = vmul.f32 %v904, 1.442695
    %v906 = vpow.pop %v905
    %v907 = vsub.f32 %v892, %v897
    %v908 = vmul.f32 %v907, 1.442695
    %v909 = vpow.pop %v908
    %v910 = vadd.f32 %v900, %v903
    %v911 = vadd.f32 %v910, %v906
    %v912 = vadd.f32 %v911, %v909
    %v913 = vrcp.pop %v912
    %v914 = vmul.f32 %v912, %v913
    %v915 = vsub.f32 2.0, %v914
    %v916 = vmul.f32 %v913, %v915
    %v917 = vmul.f32 %v900, %v916
    %vm918 = vcmask 31744
    %v920 = vsel %vm918, %v917, 0
    %vm922 = vcmask 1043456
    %v924 = vsel %vm922, %v63, 0
    %926 = vmatprep.subr.mxu0 0.0
    %927 = vmatpush1.msra.mxu0 %v924
    %928 = vmatprep.subr.mxu0 0.0
    %929 = vmatpush1.msra.mxu0 0.0
    %930 = vmatprep.subr.mxu0 0.0
    %931 = vmatpush1.msra.mxu0 0.0
    %932 = vmatprep.subr.mxu0 0.0
    %933 = vmatpush1.msra.mxu0 0.0
    %934 = vmatprep.subr.mxu0 0.0
    %935 = vmatpush1.msra.mxu0 0.0
    %936 = vmatprep.subr.mxu0 0.0
    %937 = vmatpush1.msra.mxu0 0.0
    %938 = vmatprep.subr.mxu0 0.0
    %939 = vmatpush1.msra.mxu0 0.0
    %940 = vmatprep.subr.mxu0 0.0
    %941 = vmatpush1.msra.mxu0 0.0
    %942 = vmatprep.subr.mxu0 0.0
    %943 = vmatpush1.msra.mxu0 0.0
    %944 = vmatprep.subr.mxu0 0.0
    %945 = vmatpush1.msra.mxu0 0.0
    %946 = vmatprep.subr.mxu0 0.0
    %947 = vmatpush1.msra.mxu0 0.0
    %948 = vmatprep.subr.mxu0 0.0
    %949 = vmatpush1.msra.mxu0 0.0
    %950 = vmatprep.subr.mxu0 0.0
    %951 = vmatpush1.msra.mxu0 0.0
    %952 = vmatprep.subr.mxu0 0.0
    %953 = vmatpush1.msra.mxu0 0.0
    %954 = vmatprep.subr.mxu0 0.0
    %955 = vmatpush1.msra.mxu0 0.0
    %956 = vmatprep.subr.mxu0 0.0
    %957 = vmatpush1.msra.mxu0 0.0
    %958 = vmatprep.subr.mxu0 0.0
    %959 = vmatpush1.msra.mxu0 0.0
    %960 = vmatprep.subr.mxu0 0.0
    %961 = vmatpush1.msra.mxu0 0.0
    %962 = vmatprep.subr.mxu0 0.0
    %963 = vmatpush1.msra.mxu0 0.0
    %964 = vmatprep.subr.mxu0 0.0
    %965 = vmatpush1.msra.mxu0 0.0
    %966 = vmatprep.subr.mxu0 0.0
    %967 = vmatpush1.msra.mxu0 0.0
    %968 = vmatprep.subr.mxu0 0.0
    %969 = vmatpush1.msra.mxu0 0.0
    %970 = vmatprep.subr.mxu0 0.0
    %971 = vmatpush1.msra.mxu0 0.0
    %972 = vmatprep.subr.mxu0 0.0
    %973 = vmatpush1.msra.mxu0 0.0
    %974 = vmatprep.subr.mxu0 0.0
    %975 = vmatpush1.msra.mxu0 0.0
    %976 = vmatprep.subr.mxu0 0.0
    %977 = vmatpush1.msra.mxu0 0.0
    %978 = vmatprep.subr.mxu0 0.0
    %979 = vmatpush1.msra.mxu0 0.0
    %980 = vmatprep.subr.mxu0 0.0
    %981 = vmatpush1.msra.mxu0 0.0
    %982 = vmatprep.subr.mxu0 0.0
    %983 = vmatpush1.msra.mxu0 0.0
    %984 = vmatprep.subr.mxu0 0.0
    %985 = vmatpush1.msra.mxu0 0.0
    %986 = vmatprep.subr.mxu0 0.0
    %987 = vmatpush1.msra.mxu0 0.0
    %988 = vmatprep.subr.mxu0 0.0
    %989 = vmatpush1.msra.mxu0 0.0
    %990 = vmatprep.mubr.f32.mxu0 0.0
    %991 = vmatmul.mubr.f32.gmra.mrb[0].mxu0 %v920
    %v992 = vpop.f32.mrb[0].mxu0
    %v993 = vadd.f32 0.0, %v992
    %v994 = vpop.f32.mrb[0].mxu0
    %995 = vdwg.mxu0
    %v996 = vmul.f32 %v993, %v386
    %v997 = vmul.f32 %v903, %v916
    %v999 = vsel %vm918, %v997, 0
    %1001 = vmatprep.subr.mxu0 0.0
    %1002 = vmatpush1.msra.mxu0 %v924
    %1003 = vmatprep.subr.mxu0 0.0
    %1004 = vmatpush1.msra.mxu0 0.0
    %1005 = vmatprep.subr.mxu0 0.0
    %1006 = vmatpush1.msra.mxu0 0.0
    %1007 = vmatprep.subr.mxu0 0.0
    %1008 = vmatpush1.msra.mxu0 0.0
    %1009 = vmatprep.subr.mxu0 0.0
    %1010 = vmatpush1.msra.mxu0 0.0
    %1011 = vmatprep.subr.mxu0 0.0
    %1012 = vmatpush1.msra.mxu0 0.0
    %1013 = vmatprep.subr.mxu0 0.0
    %1014 = vmatpush1.msra.mxu0 0.0
    %1015 = vmatprep.subr.mxu0 0.0
    %1016 = vmatpush1.msra.mxu0 0.0
    %1017 = vmatprep.subr.mxu0 0.0
    %1018 = vmatpush1.msra.mxu0 0.0
    %1019 = vmatprep.subr.mxu0 0.0
    %1020 = vmatpush1.msra.mxu0 0.0
    %1021 = vmatprep.subr.mxu0 0.0
    %1022 = vmatpush1.msra.mxu0 0.0
    %1023 = vmatprep.subr.mxu0 0.0
    %1024 = vmatpush1.msra.mxu0 0.0
    %1025 = vmatprep.subr.mxu0 0.0
    %1026 = vmatpush1.msra.mxu0 0.0
    %1027 = vmatprep.subr.mxu0 0.0
    %1028 = vmatpush1.msra.mxu0 0.0
    %1029 = vmatprep.subr.mxu0 0.0
    %1030 = vmatpush1.msra.mxu0 0.0
    %1031 = vmatprep.subr.mxu0 0.0
    %1032 = vmatpush1.msra.mxu0 0.0
    %1033 = vmatprep.subr.mxu0 0.0
    %1034 = vmatpush1.msra.mxu0 0.0
    %1035 = vmatprep.subr.mxu0 0.0
    %1036 = vmatpush1.msra.mxu0 0.0
    %1037 = vmatprep.subr.mxu0 0.0
    %1038 = vmatpush1.msra.mxu0 0.0
    %1039 = vmatprep.subr.mxu0 0.0
    %1040 = vmatpush1.msra.mxu0 0.0
    %1041 = vmatprep.subr.mxu0 0.0
    %1042 = vmatpush1.msra.mxu0 0.0
    %1043 = vmatprep.subr.mxu0 0.0
    %1044 = vmatpush1.msra.mxu0 0.0
    %1045 = vmatprep.subr.mxu0 0.0
    %1046 = vmatpush1.msra.mxu0 0.0
    %1047 = vmatprep.subr.mxu0 0.0
    %1048 = vmatpush1.msra.mxu0 0.0
    %1049 = vmatprep.subr.mxu0 0.0
    %1050 = vmatpush1.msra.mxu0 0.0
    %1051 = vmatprep.subr.mxu0 0.0
    %1052 = vmatpush1.msra.mxu0 0.0
    %1053 = vmatprep.subr.mxu0 0.0
    %1054 = vmatpush1.msra.mxu0 0.0
    %1055 = vmatprep.subr.mxu0 0.0
    %1056 = vmatpush1.msra.mxu0 0.0
    %1057 = vmatprep.subr.mxu0 0.0
    %1058 = vmatpush1.msra.mxu0 0.0
    %1059 = vmatprep.subr.mxu0 0.0
    %1060 = vmatpush1.msra.mxu0 0.0
    %1061 = vmatprep.subr.mxu0 0.0
    %1062 = vmatpush1.msra.mxu0 0.0
    %1063 = vmatprep.subr.mxu0 0.0
    %1064 = vmatpush1.msra.mxu0 0.0
    %1065 = vmatprep.mubr.f32.mxu0 0.0
    %1066 = vmatmul.mubr.f32.gmra.mrb[0].mxu0 %v999
    %v1067 = vpop.f32.mrb[0].mxu0
    %v1068 = vadd.f32 0.0, %v1067
    %v1069 = vpop.f32.mrb[0].mxu0
    %1070 = vdwg.mxu0
    %v1071 = vmul.f32 %v1068, %v530
    %v1072 = vadd.f32 %v996, %v1071
    %v1073 = vmul.f32 %v906, %v916
    %v1075 = vsel %vm918, %v1073, 0
    %1077 = vmatprep.subr.mxu0 0.0
    %1078 = vmatpush1.msra.mxu0 %v924
    %1079 = vmatprep.subr.mxu0 0.0
    %1080 = vmatpush1.msra.mxu0 0.0
    %1081 = vmatprep.subr.mxu0 0.0
    %1082 = vmatpush1.msra.mxu0 0.0
    %1083 = vmatprep.subr.mxu0 0.0
    %1084 = vmatpush1.msra.mxu0 0.0
    %1085 = vmatprep.subr.mxu0 0.0
    %1086 = vmatpush1.msra.mxu0 0.0
    %1087 = vmatprep.subr.mxu0 0.0
    %1088 = vmatpush1.msra.mxu0 0.0
    %1089 = vmatprep.subr.mxu0 0.0
    %1090 = vmatpush1.msra.mxu0 0.0
    %1091 = vmatprep.subr.mxu0 0.0
    %1092 = vmatpush1.msra.mxu0 0.0
    %1093 = vmatprep.subr.mxu0 0.0
    %1094 = vmatpush1.msra.mxu0 0.0
    %1095 = vmatprep.subr.mxu0 0.0
    %1096 = vmatpush1.msra.mxu0 0.0
    %1097 = vmatprep.subr.mxu0 0.0
    %1098 = vmatpush1.msra.mxu0 0.0
    %1099 = vmatprep.subr.mxu0 0.0
    %1100 = vmatpush1.msra.mxu0 0.0
    %1101 = vmatprep.subr.mxu0 0.0
    %1102 = vmatpush1.msra.mxu0 0.0
    %1103 = vmatprep.subr.mxu0 0.0
    %1104 = vmatpush1.msra.mxu0 0.0
    %1105 = vmatprep.subr.mxu0 0.0
    %1106 = vmatpush1.msra.mxu0 0.0
    %1107 = vmatprep.subr.mxu0 0.0
    %1108 = vmatpush1.msra.mxu0 0.0
    %1109 = vmatprep.subr.mxu0 0.0
    %1110 = vmatpush1.msra.mxu0 0.0
    %1111 = vmatprep.subr.mxu0 0.0
    %1112 = vmatpush1.msra.mxu0 0.0
    %1113 = vmatprep.subr.mxu0 0.0
    %1114 = vmatpush1.msra.mxu0 0.0
    %1115 = vmatprep.subr.mxu0 0.0
    %1116 = vmatpush1.msra.mxu0 0.0
    %1117 = vmatprep.subr.mxu0 0.0
    %1118 = vmatpush1.msra.mxu0 0.0
    %1119 = vmatprep.subr.mxu0 0.0
    %1120 = vmatpush1.msra.mxu0 0.0
    %1121 = vmatprep.subr.mxu0 0.0
    %1122 = vmatpush1.msra.mxu0 0.0
    %1123 = vmatprep.subr.mxu0 0.0
    %1124 = vmatpush1.msra.mxu0 0.0
    %1125 = vmatprep.subr.mxu0 0.0
    %1126 = vmatpush1.msra.mxu0 0.0
    %1127 = vmatprep.subr.mxu0 0.0
    %1128 = vmatpush1.msra.mxu0 0.0
    %1129 = vmatprep.subr.mxu0 0.0
    %1130 = vmatpush1.msra.mxu0 0.0
    %1131 = vmatprep.subr.mxu0 0.0
    %1132 = vmatpush1.msra.mxu0 0.0
    %1133 = vmatprep.subr.mxu0 0.0
    %1134 = vmatpush1.msra.mxu0 0.0
    %1135 = vmatprep.subr.mxu0 0.0
    %1136 = vmatpush1.msra.mxu0 0.0
    %1137 = vmatprep.subr.mxu0 0.0
    %1138 = vmatpush1.msra.mxu0 0.0
    %1139 = vmatprep.subr.mxu0 0.0
    %1140 = vmatpush1.msra.mxu0 0.0
    %1141 = vmatprep.mubr.f32.mxu0 0.0
    %1142 = vmatmul.mubr.f32.gmra.mrb[0].mxu0 %v1075
    %v1143 = vpop.f32.mrb[0].mxu0
    %v1144 = vadd.f32 0.0, %v1143
    %v1145 = vpop.f32.mrb[0].mxu0
    %1146 = vdwg.mxu0
    %v1147 = vmul.f32 %v1144, %v674
    %v1148 = vadd.f32 %v1072, %v1147
    %v1149 = vmul.f32 %v909, %v916
    %v1151 = vsel %vm918, %v1149, 0
    %1153 = vmatprep.subr.mxu0 0.0
    %1154 = vmatpush1.msra.mxu0 %v924
    %1155 = vmatprep.subr.mxu0 0.0
    %1156 = vmatpush1.msra.mxu0 0.0
    %1157 = vmatprep.subr.mxu0 0.0
    %1158 = vmatpush1.msra.mxu0 0.0
    %1159 = vmatprep.subr.mxu0 0.0
    %1160 = vmatpush1.msra.mxu0 0.0
    %1161 = vmatprep.subr.mxu0 0.0
    %1162 = vmatpush1.msra.mxu0 0.0
    %1163 = vmatprep.subr.mxu0 0.0
    %1164 = vmatpush1.msra.mxu0 0.0
    %1165 = vmatprep.subr.mxu0 0.0
    %1166 = vmatpush1.msra.mxu0 0.0
    %1167 = vmatprep.subr.mxu0 0.0
    %1168 = vmatpush1.msra.mxu0 0.0
    %1169 = vmatprep.subr.mxu0 0.0
    %1170 = vmatpush1.msra.mxu0 0.0
    %1171 = vmatprep.subr.mxu0 0.0
    %1172 = vmatpush1.msra.mxu0 0.0
    %1173 = vmatprep.subr.mxu0 0.0
    %1174 = vmatpush1.msra.mxu0 0.0
    %1175 = vmatprep.subr.mxu0 0.0
    %1176 = vmatpush1.msra.mxu0 0.0
    %1177 = vmatprep.subr.mxu0 0.0
    %1178 = vmatpush1.msra.mxu0 0.0
    %1179 = vmatprep.subr.mxu0 0.0
    %1180 = vmatpush1.msra.mxu0 0.0
    %1181 = vmatprep.subr.mxu0 0.0
    %1182 = vmatpush1.msra.mxu0 0.0
    %1183 = vmatprep.subr.mxu0 0.0
    %1184 = vmatpush1.msra.mxu0 0.0
    %1185 = vmatprep.subr.mxu0 0.0
    %1186 = vmatpush1.msra.mxu0 0.0
    %1187 = vmatprep.subr.mxu0 0.0
    %1188 = vmatpush1.msra.mxu0 0.0
    %1189 = vmatprep.subr.mxu0 0.0
    %1190 = vmatpush1.msra.mxu0 0.0
    %1191 = vmatprep.subr.mxu0 0.0
    %1192 = vmatpush1.msra.mxu0 0.0
    %1193 = vmatprep.subr.mxu0 0.0
    %1194 = vmatpush1.msra.mxu0 0.0
    %1195 = vmatprep.subr.mxu0 0.0
    %1196 = vmatpush1.msra.mxu0 0.0
    %1197 = vmatprep.subr.mxu0 0.0
    %1198 = vmatpush1.msra.mxu0 0.0
    %1199 = vmatprep.subr.mxu0 0.0
    %1200 = vmatpush1.msra.mxu0 0.0
    %1201 = vmatprep.subr.mxu0 0.0
    %1202 = vmatpush1.msra.mxu0 0.0
    %1203 = vmatprep.subr.mxu0 0.0
    %1204 = vmatpush1.msra.mxu0 0.0
    %1205 = vmatprep.subr.mxu0 0.0
    %1206 = vmatpush1.msra.mxu0 0.0
    %1207 = vmatprep.subr.mxu0 0.0
    %1208 = vmatpush1.msra.mxu0 0.0
    %1209 = vmatprep.subr.mxu0 0.0
    %1210 = vmatpush1.msra.mxu0 0.0
    %1211 = vmatprep.subr.mxu0 0.0
    %1212 = vmatpush1.msra.mxu0 0.0
    %1213 = vmatprep.subr.mxu0 0.0
    %1214 = vmatpush1.msra.mxu0 0.0
    %1215 = vmatprep.subr.mxu0 0.0
    %1216 = vmatpush1.msra.mxu0 0.0
    %1217 = vmatprep.mubr.f32.mxu0 0.0
    %1218 = vmatmul.mubr.f32.gmra.mrb[0].mxu0 %v1151
    %v1219 = vpop.f32.mrb[0].mxu0
    %v1220 = vadd.f32 0.0, %v1219
    %v1221 = vpop.f32.mrb[0].mxu0
    %1222 = vdwg.mxu0
    %v1223 = vmul.f32 %v1220, %v818
    %v1224 = vadd.f32 %v1148, %v1223
    %v1225 = vlaneseq
    %v1226 = vshrl.u32 %v1225, 7
    %v1227 = vsub.s32 0, %v1226
    %v1228 = vrot.slane %v33, %v1227
    %v1230 = vsel %vm232, %v1224, 0
    %1232 = vmatprep.subr.mxu0 0.0
    %1233 = vmatpush1.msra.mxu0 %v30
    %1234 = vmatprep.subr.mxu0 0.0
    %1235 = vmatpush1.msra.mxu0 %v31
    %1236 = vmatprep.subr.mxu0 0.0
    %1237 = vmatpush1.msra.mxu0 %v32
    %1238 = vmatprep.subr.mxu0 0.0
    %1239 = vmatpush1.msra.mxu0 0.0
    %1240 = vmatprep.subr.mxu0 0.0
    %1241 = vmatpush1.msra.mxu0 0.0
    %1242 = vmatprep.subr.mxu0 0.0
    %1243 = vmatpush1.msra.mxu0 0.0
    %1244 = vmatprep.subr.mxu0 0.0
    %1245 = vmatpush1.msra.mxu0 0.0
    %1246 = vmatprep.subr.mxu0 0.0
    %1247 = vmatpush1.msra.mxu0 0.0
    %1248 = vmatprep.subr.mxu0 0.0
    %1249 = vmatpush1.msra.mxu0 0.0
    %1250 = vmatprep.subr.mxu0 0.0
    %1251 = vmatpush1.msra.mxu0 0.0
    %1252 = vmatprep.subr.mxu0 0.0
    %1253 = vmatpush1.msra.mxu0 0.0
    %1254 = vmatprep.subr.mxu0 0.0
    %1255 = vmatpush1.msra.mxu0 0.0
    %1256 = vmatprep.subr.mxu0 0.0
    %1257 = vmatpush1.msra.mxu0 0.0
    %1258 = vmatprep.subr.mxu0 0.0
    %1259 = vmatpush1.msra.mxu0 0.0
    %1260 = vmatprep.subr.mxu0 0.0
    %1261 = vmatpush1.msra.mxu0 0.0
    %1262 = vmatprep.subr.mxu0 0.0
    %1263 = vmatpush1.msra.mxu0 0.0
    %1264 = vmatprep.subr.mxu0 0.0
    %1265 = vmatpush1.msra.mxu0 0.0
    %1266 = vmatprep.subr.mxu0 0.0
    %1267 = vmatpush1.msra.mxu0 0.0
    %1268 = vmatprep.subr.mxu0 0.0
    %1269 = vmatpush1.msra.mxu0 0.0
    %1270 = vmatprep.subr.mxu0 0.0
    %1271 = vmatpush1.msra.mxu0 0.0
    %1272 = vmatprep.subr.mxu0 0.0
    %1273 = vmatpush1.msra.mxu0 0.0
    %1274 = vmatprep.subr.mxu0 0.0
    %1275 = vmatpush1.msra.mxu0 0.0
    %1276 = vmatprep.subr.mxu0 0.0
    %1277 = vmatpush1.msra.mxu0 0.0
    %1278 = vmatprep.subr.mxu0 0.0
    %1279 = vmatpush1.msra.mxu0 0.0
    %1280 = vmatprep.subr.mxu0 0.0
    %1281 = vmatpush1.msra.mxu0 0.0
    %1282 = vmatprep.subr.mxu0 0.0
    %1283 = vmatpush1.msra.mxu0 0.0
    %1284 = vmatprep.subr.mxu0 0.0
    %1285 = vmatpush1.msra.mxu0 0.0
    %1286 = vmatprep.subr.mxu0 0.0
    %1287 = vmatpush1.msra.mxu0 0.0
    %1288 = vmatprep.subr.mxu0 0.0
    %1289 = vmatpush1.msra.mxu0 0.0
    %1290 = vmatprep.subr.mxu0 0.0
    %1291 = vmatpush1.msra.mxu0 0.0
    %1292 = vmatprep.subr.mxu0 0.0
    %1293 = vmatpush1.msra.mxu0 0.0
    %1294 = vmatprep.subr.mxu0 0.0
    %1295 = vmatpush1.msra.mxu0 0.0
    %1296 = vmatprep.mubr.f32.mxu0 0.0
    %1297 = vmatmul.mubr.f32.gmra.mrb[0].mxu0 %v1230
    %v1298 = vpop.f32.mrb[0].mxu0
    %v1299 = vadd.f32 %v1228, %v1298
    %v1300 = vpop.f32.mrb[0].mxu0
    %1301 = vdwg.mxu0
    %v1302 = vmul.f32 %v1299, 0.5
    %v1303 = vtanh.pop %v1302
    %v1304 = vadd.f32 %v1303, 1.0
    %v1305 = vmul.f32 %v1304, 0.5
    %v1306 = vmul.f32 %v1299, %v1305
    %vm1307 = vcmask 64512
    %v1309 = vsel %vm1307, %v1306, 0
    %1311 = vmatprep.subr.mxu0 0.0
    %1312 = vmatpush1.msra.mxu0 %v29
    %1313 = vmatprep.subr.mxu0 0.0
    %1314 = vmatpush1.msra.mxu0 0.0
    %1315 = vmatprep.subr.mxu0 0.0
    %1316 = vmatpush1.msra.mxu0 0.0
    %1317 = vmatprep.subr.mxu0 0.0
    %1318 = vmatpush1.msra.mxu0 0.0
    %1319 = vmatprep.subr.mxu0 0.0
    %1320 = vmatpush1.msra.mxu0 0.0
    %1321 = vmatprep.subr.mxu0 0.0
    %1322 = vmatpush1.msra.mxu0 0.0
    %1323 = vmatprep.subr.mxu0 0.0
    %1324 = vmatpush1.msra.mxu0 0.0
    %1325 = vmatprep.subr.mxu0 0.0
    %1326 = vmatpush1.msra.mxu0 0.0
    %1327 = vmatprep.subr.mxu0 0.0
    %1328 = vmatpush1.msra.mxu0 0.0
    %1329 = vmatprep.subr.mxu0 0.0
    %1330 = vmatpush1.msra.mxu0 0.0
    %1331 = vmatprep.subr.mxu0 0.0
    %1332 = vmatpush1.msra.mxu0 0.0
    %1333 = vmatprep.subr.mxu0 0.0
    %1334 = vmatpush1.msra.mxu0 0.0
    %1335 = vmatprep.subr.mxu0 0.0
    %1336 = vmatpush1.msra.mxu0 0.0
    %1337 = vmatprep.subr.mxu0 0.0
    %1338 = vmatpush1.msra.mxu0 0.0
    %1339 = vmatprep.subr.mxu0 0.0
    %1340 = vmatpush1.msra.mxu0 0.0
    %1341 = vmatprep.subr.mxu0 0.0
    %1342 = vmatpush1.msra.mxu0 0.0
    %1343 = vmatprep.subr.mxu0 0.0
    %1344 = vmatpush1.msra.mxu0 0.0
    %1345 = vmatprep.subr.mxu0 0.0
    %1346 = vmatpush1.msra.mxu0 0.0
    %1347 = vmatprep.subr.mxu0 0.0
    %1348 = vmatpush1.msra.mxu0 0.0
    %1349 = vmatprep.subr.mxu0 0.0
    %1350 = vmatpush1.msra.mxu0 0.0
    %1351 = vmatprep.subr.mxu0 0.0
    %1352 = vmatpush1.msra.mxu0 0.0
    %1353 = vmatprep.subr.mxu0 0.0
    %1354 = vmatpush1.msra.mxu0 0.0
    %1355 = vmatprep.subr.mxu0 0.0
    %1356 = vmatpush1.msra.mxu0 0.0
    %1357 = vmatprep.subr.mxu0 0.0
    %1358 = vmatpush1.msra.mxu0 0.0
    %1359 = vmatprep.subr.mxu0 0.0
    %1360 = vmatpush1.msra.mxu0 0.0
    %1361 = vmatprep.subr.mxu0 0.0
    %1362 = vmatpush1.msra.mxu0 0.0
    %1363 = vmatprep.subr.mxu0 0.0
    %1364 = vmatpush1.msra.mxu0 0.0
    %1365 = vmatprep.subr.mxu0 0.0
    %1366 = vmatpush1.msra.mxu0 0.0
    %1367 = vmatprep.subr.mxu0 0.0
    %1368 = vmatpush1.msra.mxu0 0.0
    %1369 = vmatprep.subr.mxu0 0.0
    %1370 = vmatpush1.msra.mxu0 0.0
    %1371 = vmatprep.subr.mxu0 0.0
    %1372 = vmatpush1.msra.mxu0 0.0
    %1373 = vmatprep.subr.mxu0 0.0
    %1374 = vmatpush1.msra.mxu0 0.0
    %1375 = vmatprep.mubr.f32.mxu0 0.0
    %1376 = vmatmul.mubr.f32.gmra.mrb[0].mxu0 %v1309
    %v1377 = vpop.f32.mrb[0].mxu0
    %v1378 = vadd.f32 0.0, %v1377
    %v1379 = vpop.f32.mrb[0].mxu0
    %1380 = vdwg.mxu0
    %1382 = vrot.lane.b32.xlu0 %v1378, 24
    %v1383 = vpop.permute.xlu0 %1382
    %v1385 = vadd.f32 %v303, %v1383
    %v1386 = vlaneseq
    %v1387 = vshrl.u32 %v1386, 7
    %v1388 = vsub.s32 1, %v1387
    %v1389 = vrot.slane %v28, %v1388
    %1391 = vrot.lane.b32.xlu0 %v1389, 24
    %v1392 = vpop.permute.xlu0 %1391
    %v1394 = vadd.f32 %v1385, %v1392
    %v1395 = vmul.f32 %v1394, 0.5
    %v1396 = vtanh.pop %v1395
    %v1397 = vadd.f32 %v1396, 1.0
    %v1398 = vmul.f32 %v1397, 0.5
    %v1399 = vmul.f32 %v1394, %v1398
    %1401 = vrot.lane.b32.xlu0 %v1399, 104
    %v1402 = vpop.permute.xlu0 %1401
    %v1403 = vsel %vm232, %v1402, 0
    %1405 = vmatprep.subr.mxu0 0.0
    %1406 = vmatpush1.msra.mxu0 %v103
    %1407 = vmatprep.subr.mxu0 0.0
    %1408 = vmatpush1.msra.mxu0 %v104
    %1409 = vmatprep.subr.mxu0 0.0
    %1410 = vmatpush1.msra.mxu0 %v105
    %1411 = vmatprep.subr.mxu0 0.0
    %1412 = vmatpush1.msra.mxu0 0.0
    %1413 = vmatprep.subr.mxu0 0.0
    %1414 = vmatpush1.msra.mxu0 0.0
    %1415 = vmatprep.subr.mxu0 0.0
    %1416 = vmatpush1.msra.mxu0 0.0
    %1417 = vmatprep.subr.mxu0 0.0
    %1418 = vmatpush1.msra.mxu0 0.0
    %1419 = vmatprep.subr.mxu0 0.0
    %1420 = vmatpush1.msra.mxu0 0.0
    %1421 = vmatprep.subr.mxu0 0.0
    %1422 = vmatpush1.msra.mxu0 0.0
    %1423 = vmatprep.subr.mxu0 0.0
    %1424 = vmatpush1.msra.mxu0 0.0
    %1425 = vmatprep.subr.mxu0 0.0
    %1426 = vmatpush1.msra.mxu0 0.0
    %1427 = vmatprep.subr.mxu0 0.0
    %1428 = vmatpush1.msra.mxu0 0.0
    %1429 = vmatprep.subr.mxu0 0.0
    %1430 = vmatpush1.msra.mxu0 0.0
    %1431 = vmatprep.subr.mxu0 0.0
    %1432 = vmatpush1.msra.mxu0 0.0
    %1433 = vmatprep.subr.mxu0 0.0
    %1434 = vmatpush1.msra.mxu0 0.0
    %1435 = vmatprep.subr.mxu0 0.0
    %1436 = vmatpush1.msra.mxu0 0.0
    %1437 = vmatprep.subr.mxu0 0.0
    %1438 = vmatpush1.msra.mxu0 0.0
    %1439 = vmatprep.subr.mxu0 0.0
    %1440 = vmatpush1.msra.mxu0 0.0
    %1441 = vmatprep.subr.mxu0 0.0
    %1442 = vmatpush1.msra.mxu0 0.0
    %1443 = vmatprep.subr.mxu0 0.0
    %1444 = vmatpush1.msra.mxu0 0.0
    %1445 = vmatprep.subr.mxu0 0.0
    %1446 = vmatpush1.msra.mxu0 0.0
    %1447 = vmatprep.subr.mxu0 0.0
    %1448 = vmatpush1.msra.mxu0 0.0
    %1449 = vmatprep.subr.mxu0 0.0
    %1450 = vmatpush1.msra.mxu0 0.0
    %1451 = vmatprep.subr.mxu0 0.0
    %1452 = vmatpush1.msra.mxu0 0.0
    %1453 = vmatprep.subr.mxu0 0.0
    %1454 = vmatpush1.msra.mxu0 0.0
    %1455 = vmatprep.subr.mxu0 0.0
    %1456 = vmatpush1.msra.mxu0 0.0
    %1457 = vmatprep.subr.mxu0 0.0
    %1458 = vmatpush1.msra.mxu0 0.0
    %1459 = vmatprep.subr.mxu0 0.0
    %1460 = vmatpush1.msra.mxu0 0.0
    %1461 = vmatprep.subr.mxu0 0.0
    %1462 = vmatpush1.msra.mxu0 0.0
    %1463 = vmatprep.subr.mxu0 0.0
    %1464 = vmatpush1.msra.mxu0 0.0
    %1465 = vmatprep.subr.mxu0 0.0
    %1466 = vmatpush1.msra.mxu0 0.0
    %1467 = vmatprep.subr.mxu0 0.0
    %1468 = vmatpush1.msra.mxu0 0.0
    %1469 = vmatprep.mubr.f32.mxu0 0.0
    %1470 = vmatmul.mubr.f32.gmra.mrb[0].mxu0 %v1403
    %v1471 = vpop.f32.mrb[0].mxu0
    %v1472 = vadd.f32 0.0, %v1471
    %v1473 = vpop.f32.mrb[0].mxu0
    %1474 = vdwg.mxu0
    %1476 = vrot.lane.b32.xlu0 %v1472, 24
    %v1477 = vpop.permute.xlu0 %1476
    %v1479 = vmul.f32 %v1399, %v1477
    %1481 = vrot.lane.b32.xlu0 %v1479, 104
    %v1482 = vpop.permute.xlu0 %1481
    %v1483 = vsel %vm232, %v1482, 0
    %1485 = vmatprep.subr.mxu0 0.0
    %1486 = vmatpush1.msra.mxu0 %v54
    %1487 = vmatprep.subr.mxu0 0.0
    %1488 = vmatpush1.msra.mxu0 %v55
    %1489 = vmatprep.subr.mxu0 0.0
    %1490 = vmatpush1.msra.mxu0 %v56
    %1491 = vmatprep.subr.mxu0 0.0
    %1492 = vmatpush1.msra.mxu0 0.0
    %1493 = vmatprep.subr.mxu0 0.0
    %1494 = vmatpush1.msra.mxu0 0.0
    %1495 = vmatprep.subr.mxu0 0.0
    %1496 = vmatpush1.msra.mxu0 0.0
    %1497 = vmatprep.subr.mxu0 0.0
    %1498 = vmatpush1.msra.mxu0 0.0
    %1499 = vmatprep.subr.mxu0 0.0
    %1500 = vmatpush1.msra.mxu0 0.0
    %1501 = vmatprep.subr.mxu0 0.0
    %1502 = vmatpush1.msra.mxu0 0.0
    %1503 = vmatprep.subr.mxu0 0.0
    %1504 = vmatpush1.msra.mxu0 0.0
    %1505 = vmatprep.subr.mxu0 0.0
    %1506 = vmatpush1.msra.mxu0 0.0
    %1507 = vmatprep.subr.mxu0 0.0
    %1508 = vmatpush1.msra.mxu0 0.0
    %1509 = vmatprep.subr.mxu0 0.0
    %1510 = vmatpush1.msra.mxu0 0.0
    %1511 = vmatprep.subr.mxu0 0.0
    %1512 = vmatpush1.msra.mxu0 0.0
    %1513 = vmatprep.subr.mxu0 0.0
    %1514 = vmatpush1.msra.mxu0 0.0
    %1515 = vmatprep.subr.mxu0 0.0
    %1516 = vmatpush1.msra.mxu0 0.0
    %1517 = vmatprep.subr.mxu0 0.0
    %1518 = vmatpush1.msra.mxu0 0.0
    %1519 = vmatprep.subr.mxu0 0.0
    %1520 = vmatpush1.msra.mxu0 0.0
    %1521 = vmatprep.subr.mxu0 0.0
    %1522 = vmatpush1.msra.mxu0 0.0
    %1523 = vmatprep.subr.mxu0 0.0
    %1524 = vmatpush1.msra.mxu0 0.0
    %1525 = vmatprep.subr.mxu0 0.0
    %1526 = vmatpush1.msra.mxu0 0.0
    %1527 = vmatprep.subr.mxu0 0.0
    %1528 = vmatpush1.msra.mxu0 0.0
    %1529 = vmatprep.subr.mxu0 0.0
    %1530 = vmatpush1.msra.mxu0 0.0
    %1531 = vmatprep.subr.mxu0 0.0
    %1532 = vmatpush1.msra.mxu0 0.0
    %1533 = vmatprep.subr.mxu0 0.0
    %1534 = vmatpush1.msra.mxu0 0.0
    %1535 = vmatprep.subr.mxu0 0.0
    %1536 = vmatpush1.msra.mxu0 0.0
    %1537 = vmatprep.subr.mxu0 0.0
    %1538 = vmatpush1.msra.mxu0 0.0
    %1539 = vmatprep.subr.mxu0 0.0
    %1540 = vmatpush1.msra.mxu0 0.0
    %1541 = vmatprep.subr.mxu0 0.0
    %1542 = vmatpush1.msra.mxu0 0.0
    %1543 = vmatprep.subr.mxu0 0.0
    %1544 = vmatpush1.msra.mxu0 0.0
    %1545 = vmatprep.subr.mxu0 0.0
    %1546 = vmatpush1.msra.mxu0 0.0
    %1547 = vmatprep.subr.mxu0 0.0
    %1548 = vmatpush1.msra.mxu0 0.0
    %1549 = vmatprep.mubr.f32.mxu0 0.0
    %1550 = vmatmul.mubr.f32.gmra.mrb[0].mxu0 %v1483
    %v1551 = vpop.f32.mrb[0].mxu0
    %v1552 = vadd.f32 0.0, %v1551
    %v1553 = vpop.f32.mrb[0].mxu0
    %1554 = vdwg.mxu0
    %1555 = vmatprep.subr.mxu0 0.0
    %1556 = vmatpush1.msra.mxu0 %v145
    %1557 = vmatprep.subr.mxu0 0.0
    %1558 = vmatpush1.msra.mxu0 %v146
    %1559 = vmatprep.subr.mxu0 0.0
    %1560 = vmatpush1.msra.mxu0 %v147
    %1561 = vmatprep.subr.mxu0 0.0
    %1562 = vmatpush1.msra.mxu0 0.0
    %1563 = vmatprep.subr.mxu0 0.0
    %1564 = vmatpush1.msra.mxu0 0.0
    %1565 = vmatprep.subr.mxu0 0.0
    %1566 = vmatpush1.msra.mxu0 0.0
    %1567 = vmatprep.subr.mxu0 0.0
    %1568 = vmatpush1.msra.mxu0 0.0
    %1569 = vmatprep.subr.mxu0 0.0
    %1570 = vmatpush1.msra.mxu0 0.0
    %1571 = vmatprep.subr.mxu0 0.0
    %1572 = vmatpush1.msra.mxu0 0.0
    %1573 = vmatprep.subr.mxu0 0.0
    %1574 = vmatpush1.msra.mxu0 0.0
    %1575 = vmatprep.subr.mxu0 0.0
    %1576 = vmatpush1.msra.mxu0 0.0
    %1577 = vmatprep.subr.mxu0 0.0
    %1578 = vmatpush1.msra.mxu0 0.0
    %1579 = vmatprep.subr.mxu0 0.0
    %1580 = vmatpush1.msra.mxu0 0.0
    %1581 = vmatprep.subr.mxu0 0.0
    %1582 = vmatpush1.msra.mxu0 0.0
    %1583 = vmatprep.subr.mxu0 0.0
    %1584 = vmatpush1.msra.mxu0 0.0
    %1585 = vmatprep.subr.mxu0 0.0
    %1586 = vmatpush1.msra.mxu0 0.0
    %1587 = vmatprep.subr.mxu0 0.0
    %1588 = vmatpush1.msra.mxu0 0.0
    %1589 = vmatprep.subr.mxu0 0.0
    %1590 = vmatpush1.msra.mxu0 0.0
    %1591 = vmatprep.subr.mxu0 0.0
    %1592 = vmatpush1.msra.mxu0 0.0
    %1593 = vmatprep.subr.mxu0 0.0
    %1594 = vmatpush1.msra.mxu0 0.0
    %1595 = vmatprep.subr.mxu0 0.0
    %1596 = vmatpush1.msra.mxu0 0.0
    %1597 = vmatprep.subr.mxu0 0.0
    %1598 = vmatpush1.msra.mxu0 0.0
    %1599 = vmatprep.subr.mxu0 0.0
    %1600 = vmatpush1.msra.mxu0 0.0
    %1601 = vmatprep.subr.mxu0 0.0
    %1602 = vmatpush1.msra.mxu0 0.0
    %1603 = vmatprep.subr.mxu0 0.0
    %1604 = vmatpush1.msra.mxu0 0.0
    %1605 = vmatprep.subr.mxu0 0.0
    %1606 = vmatpush1.msra.mxu0 0.0
    %1607 = vmatprep.subr.mxu0 0.0
    %1608 = vmatpush1.msra.mxu0 0.0
    %1609 = vmatprep.subr.mxu0 0.0
    %1610 = vmatpush1.msra.mxu0 0.0
    %1611 = vmatprep.subr.mxu0 0.0
    %1612 = vmatpush1.msra.mxu0 0.0
    %1613 = vmatprep.subr.mxu0 0.0
    %1614 = vmatpush1.msra.mxu0 0.0
    %1615 = vmatprep.subr.mxu0 0.0
    %1616 = vmatpush1.msra.mxu0 0.0
    %1617 = vmatprep.subr.mxu0 0.0
    %1618 = vmatpush1.msra.mxu0 0.0
    %1619 = vmatprep.mubr.f32.mxu0 0.0
    %1620 = vmatmul.mubr.f32.gmra.mrb[0].mxu0 %v1403
    %v1621 = vpop.f32.mrb[0].mxu0
    %v1622 = vadd.f32 0.0, %v1621
    %v1623 = vpop.f32.mrb[0].mxu0
    %1624 = vdwg.mxu0
    %1626 = vrot.lane.b32.xlu0 %v1622, 24
    %v1627 = vpop.permute.xlu0 %1626
    %v1629 = vmul.f32 %v1399, %v1627
    %1631 = vrot.lane.b32.xlu0 %v1629, 104
    %v1632 = vpop.permute.xlu0 %1631
    %v1633 = vsel %vm232, %v1632, 0
    %1635 = vmatprep.subr.mxu0 0.0
    %1636 = vmatpush1.msra.mxu0 %v54
    %1637 = vmatprep.subr.mxu0 0.0
    %1638 = vmatpush1.msra.mxu0 %v55
    %1639 = vmatprep.subr.mxu0 0.0
    %1640 = vmatpush1.msra.mxu0 %v56
    %1641 = vmatprep.subr.mxu0 0.0
    %1642 = vmatpush1.msra.mxu0 0.0
    %1643 = vmatprep.subr.mxu0 0.0
    %1644 = vmatpush1.msra.mxu0 0.0
    %1645 = vmatprep.subr.mxu0 0.0
    %1646 = vmatpush1.msra.mxu0 0.0
    %1647 = vmatprep.subr.mxu0 0.0
    %1648 = vmatpush1.msra.mxu0 0.0
    %1649 = vmatprep.subr.mxu0 0.0
    %1650 = vmatpush1.msra.mxu0 0.0
    %1651 = vmatprep.subr.mxu0 0.0
    %1652 = vmatpush1.msra.mxu0 0.0
    %1653 = vmatprep.subr.mxu0 0.0
    %1654 = vmatpush1.msra.mxu0 0.0
    %1655 = vmatprep.subr.mxu0 0.0
    %1656 = vmatpush1.msra.mxu0 0.0
    %1657 = vmatprep.subr.mxu0 0.0
    %1658 = vmatpush1.msra.mxu0 0.0
    %1659 = vmatprep.subr.mxu0 0.0
    %1660 = vmatpush1.msra.mxu0 0.0
    %1661 = vmatprep.subr.mxu0 0.0
    %1662 = vmatpush1.msra.mxu0 0.0
    %1663 = vmatprep.subr.mxu0 0.0
    %1664 = vmatpush1.msra.mxu0 0.0
    %1665 = vmatprep.subr.mxu0 0.0
    %1666 = vmatpush1.msra.mxu0 0.0
    %1667 = vmatprep.subr.mxu0 0.0
    %1668 = vmatpush1.msra.mxu0 0.0
    %1669 = vmatprep.subr.mxu0 0.0
    %1670 = vmatpush1.msra.mxu0 0.0
    %1671 = vmatprep.subr.mxu0 0.0
    %1672 = vmatpush1.msra.mxu0 0.0
    %1673 = vmatprep.subr.mxu0 0.0
    %1674 = vmatpush1.msra.mxu0 0.0
    %1675 = vmatprep.subr.mxu0 0.0
    %1676 = vmatpush1.msra.mxu0 0.0
    %1677 = vmatprep.subr.mxu0 0.0
    %1678 = vmatpush1.msra.mxu0 0.0
    %1679 = vmatprep.subr.mxu0 0.0
    %1680 = vmatpush1.msra.mxu0 0.0
    %1681 = vmatprep.subr.mxu0 0.0
    %1682 = vmatpush1.msra.mxu0 0.0
    %1683 = vmatprep.subr.mxu0 0.0
    %1684 = vmatpush1.msra.mxu0 0.0
    %1685 = vmatprep.subr.mxu0 0.0
    %1686 = vmatpush1.msra.mxu0 0.0
    %1687 = vmatprep.subr.mxu0 0.0
    %1688 = vmatpush1.msra.mxu0 0.0
    %1689 = vmatprep.subr.mxu0 0.0
    %1690 = vmatpush1.msra.mxu0 0.0
    %1691 = vmatprep.subr.mxu0 0.0
    %1692 = vmatpush1.msra.mxu0 0.0
    %1693 = vmatprep.subr.mxu0 0.0
    %1694 = vmatpush1.msra.mxu0 0.0
    %1695 = vmatprep.subr.mxu0 0.0
    %1696 = vmatpush1.msra.mxu0 0.0
    %1697 = vmatprep.subr.mxu0 0.0
    %1698 = vmatpush1.msra.mxu0 0.0
    %1699 = vmatprep.mubr.f32.mxu0 0.0
    %1700 = vmatmul.mubr.f32.gmra.mrb[0].mxu0 %v1633
    %v1701 = vpop.f32.mrb[0].mxu0
    %v1702 = vadd.f32 0.0, %v1701
    %v1703 = vpop.f32.mrb[0].mxu0
    %1704 = vdwg.mxu0
    %1705 = vmatprep.subr.mxu0 0.0
    %1706 = vmatpush1.msra.mxu0 %v187
    %1707 = vmatprep.subr.mxu0 0.0
    %1708 = vmatpush1.msra.mxu0 %v188
    %1709 = vmatprep.subr.mxu0 0.0
    %1710 = vmatpush1.msra.mxu0 %v189
    %1711 = vmatprep.subr.mxu0 0.0
    %1712 = vmatpush1.msra.mxu0 0.0
    %1713 = vmatprep.subr.mxu0 0.0
    %1714 = vmatpush1.msra.mxu0 0.0
    %1715 = vmatprep.subr.mxu0 0.0
    %1716 = vmatpush1.msra.mxu0 0.0
    %1717 = vmatprep.subr.mxu0 0.0
    %1718 = vmatpush1.msra.mxu0 0.0
    %1719 = vmatprep.subr.mxu0 0.0
    %1720 = vmatpush1.msra.mxu0 0.0
    %1721 = vmatprep.subr.mxu0 0.0
    %1722 = vmatpush1.msra.mxu0 0.0
    %1723 = vmatprep.subr.mxu0 0.0
    %1724 = vmatpush1.msra.mxu0 0.0
    %1725 = vmatprep.subr.mxu0 0.0
    %1726 = vmatpush1.msra.mxu0 0.0
    %1727 = vmatprep.subr.mxu0 0.0
    %1728 = vmatpush1.msra.mxu0 0.0
    %1729 = vmatprep.subr.mxu0 0.0
    %1730 = vmatpush1.msra.mxu0 0.0
    %1731 = vmatprep.subr.mxu0 0.0
    %1732 = vmatpush1.msra.mxu0 0.0
    %1733 = vmatprep.subr.mxu0 0.0
    %1734 = vmatpush1.msra.mxu0 0.0
    %1735 = vmatprep.subr.mxu0 0.0
    %1736 = vmatpush1.msra.mxu0 0.0
    %1737 = vmatprep.subr.mxu0 0.0
    %1738 = vmatpush1.msra.mxu0 0.0
    %1739 = vmatprep.subr.mxu0 0.0
    %1740 = vmatpush1.msra.mxu0 0.0
    %1741 = vmatprep.subr.mxu0 0.0
    %1742 = vmatpush1.msra.mxu0 0.0
    %1743 = vmatprep.subr.mxu0 0.0
    %1744 = vmatpush1.msra.mxu0 0.0
    %1745 = vmatprep.subr.mxu0 0.0
    %1746 = vmatpush1.msra.mxu0 0.0
    %1747 = vmatprep.subr.mxu0 0.0
    %1748 = vmatpush1.msra.mxu0 0.0
    %1749 = vmatprep.subr.mxu0 0.0
    %1750 = vmatpush1.msra.mxu0 0.0
    %1751 = vmatprep.subr.mxu0 0.0
    %1752 = vmatpush1.msra.mxu0 0.0
    %1753 = vmatprep.subr.mxu0 0.0
    %1754 = vmatpush1.msra.mxu0 0.0
    %1755 = vmatprep.subr.mxu0 0.0
    %1756 = vmatpush1.msra.mxu0 0.0
    %1757 = vmatprep.subr.mxu0 0.0
    %1758 = vmatpush1.msra.mxu0 0.0
    %1759 = vmatprep.subr.mxu0 0.0
    %1760 = vmatpush1.msra.mxu0 0.0
    %1761 = vmatprep.subr.mxu0 0.0
    %1762 = vmatpush1.msra.mxu0 0.0
    %1763 = vmatprep.subr.mxu0 0.0
    %1764 = vmatpush1.msra.mxu0 0.0
    %1765 = vmatprep.subr.mxu0 0.0
    %1766 = vmatpush1.msra.mxu0 0.0
    %1767 = vmatprep.subr.mxu0 0.0
    %1768 = vmatpush1.msra.mxu0 0.0
    %1769 = vmatprep.mubr.f32.mxu0 0.0
    %1770 = vmatmul.mubr.f32.gmra.mrb[0].mxu0 %v1403
    %v1771 = vpop.f32.mrb[0].mxu0
    %v1772 = vadd.f32 0.0, %v1771
    %v1773 = vpop.f32.mrb[0].mxu0
    %1774 = vdwg.mxu0
    %1776 = vrot.lane.b32.xlu0 %v1772, 24
    %v1777 = vpop.permute.xlu0 %1776
    %v1779 = vmul.f32 %v1399, %v1777
    %1781 = vrot.lane.b32.xlu0 %v1779, 104
    %v1782 = vpop.permute.xlu0 %1781
    %v1783 = vsel %vm232, %v1782, 0
    %1785 = vmatprep.subr.mxu0 0.0
    %1786 = vmatpush1.msra.mxu0 %v54
    %1787 = vmatprep.subr.mxu0 0.0
    %1788 = vmatpush1.msra.mxu0 %v55
    %1789 = vmatprep.subr.mxu0 0.0
    %1790 = vmatpush1.msra.mxu0 %v56
    %1791 = vmatprep.subr.mxu0 0.0
    %1792 = vmatpush1.msra.mxu0 0.0
    %1793 = vmatprep.subr.mxu0 0.0
    %1794 = vmatpush1.msra.mxu0 0.0
    %1795 = vmatprep.subr.mxu0 0.0
    %1796 = vmatpush1.msra.mxu0 0.0
    %1797 = vmatprep.subr.mxu0 0.0
    %1798 = vmatpush1.msra.mxu0 0.0
    %1799 = vmatprep.subr.mxu0 0.0
    %1800 = vmatpush1.msra.mxu0 0.0
    %1801 = vmatprep.subr.mxu0 0.0
    %1802 = vmatpush1.msra.mxu0 0.0
    %1803 = vmatprep.subr.mxu0 0.0
    %1804 = vmatpush1.msra.mxu0 0.0
    %1805 = vmatprep.subr.mxu0 0.0
    %1806 = vmatpush1.msra.mxu0 0.0
    %1807 = vmatprep.subr.mxu0 0.0
    %1808 = vmatpush1.msra.mxu0 0.0
    %1809 = vmatprep.subr.mxu0 0.0
    %1810 = vmatpush1.msra.mxu0 0.0
    %1811 = vmatprep.subr.mxu0 0.0
    %1812 = vmatpush1.msra.mxu0 0.0
    %1813 = vmatprep.subr.mxu0 0.0
    %1814 = vmatpush1.msra.mxu0 0.0
    %1815 = vmatprep.subr.mxu0 0.0
    %1816 = vmatpush1.msra.mxu0 0.0
    %1817 = vmatprep.subr.mxu0 0.0
    %1818 = vmatpush1.msra.mxu0 0.0
    %1819 = vmatprep.subr.mxu0 0.0
    %1820 = vmatpush1.msra.mxu0 0.0
    %1821 = vmatprep.subr.mxu0 0.0
    %1822 = vmatpush1.msra.mxu0 0.0
    %1823 = vmatprep.subr.mxu0 0.0
    %1824 = vmatpush1.msra.mxu0 0.0
    %1825 = vmatprep.subr.mxu0 0.0
    %1826 = vmatpush1.msra.mxu0 0.0
    %1827 = vmatprep.subr.mxu0 0.0
    %1828 = vmatpush1.msra.mxu0 0.0
    %1829 = vmatprep.subr.mxu0 0.0
    %1830 = vmatpush1.msra.mxu0 0.0
    %1831 = vmatprep.subr.mxu0 0.0
    %1832 = vmatpush1.msra.mxu0 0.0
    %1833 = vmatprep.subr.mxu0 0.0
    %1834 = vmatpush1.msra.mxu0 0.0
    %1835 = vmatprep.subr.mxu0 0.0
    %1836 = vmatpush1.msra.mxu0 0.0
    %1837 = vmatprep.subr.mxu0 0.0
    %1838 = vmatpush1.msra.mxu0 0.0
    %1839 = vmatprep.subr.mxu0 0.0
    %1840 = vmatpush1.msra.mxu0 0.0
    %1841 = vmatprep.subr.mxu0 0.0
    %1842 = vmatpush1.msra.mxu0 0.0
    %1843 = vmatprep.subr.mxu0 0.0
    %1844 = vmatpush1.msra.mxu0 0.0
    %1845 = vmatprep.subr.mxu0 0.0
    %1846 = vmatpush1.msra.mxu0 0.0
    %1847 = vmatprep.subr.mxu0 0.0
    %1848 = vmatpush1.msra.mxu0 0.0
    %1849 = vmatprep.mubr.f32.mxu0 0.0
    %1850 = vmatmul.mubr.f32.gmra.mrb[0].mxu0 %v1783
    %v1851 = vpop.f32.mrb[0].mxu0
    %v1852 = vadd.f32 0.0, %v1851
    %v1853 = vpop.f32.mrb[0].mxu0
    %1854 = vdwg.mxu0
    %1855 = vmatprep.subr.mxu0 0.0
    %1856 = vmatpush1.msra.mxu0 %v229
    %1857 = vmatprep.subr.mxu0 0.0
    %1858 = vmatpush1.msra.mxu0 %v230
    %1859 = vmatprep.subr.mxu0 0.0
    %1860 = vmatpush1.msra.mxu0 %v231
    %1861 = vmatprep.subr.mxu0 0.0
    %1862 = vmatpush1.msra.mxu0 0.0
    %1863 = vmatprep.subr.mxu0 0.0
    %1864 = vmatpush1.msra.mxu0 0.0
    %1865 = vmatprep.subr.mxu0 0.0
    %1866 = vmatpush1.msra.mxu0 0.0
    %1867 = vmatprep.subr.mxu0 0.0
    %1868 = vmatpush1.msra.mxu0 0.0
    %1869 = vmatprep.subr.mxu0 0.0
    %1870 = vmatpush1.msra.mxu0 0.0
    %1871 = vmatprep.subr.mxu0 0.0
    %1872 = vmatpush1.msra.mxu0 0.0
    %1873 = vmatprep.subr.mxu0 0.0
    %1874 = vmatpush1.msra.mxu0 0.0
    %1875 = vmatprep.subr.mxu0 0.0
    %1876 = vmatpush1.msra.mxu0 0.0
    %1877 = vmatprep.subr.mxu0 0.0
    %1878 = vmatpush1.msra.mxu0 0.0
    %1879 = vmatprep.subr.mxu0 0.0
    %1880 = vmatpush1.msra.mxu0 0.0
    %1881 = vmatprep.subr.mxu0 0.0
    %1882 = vmatpush1.msra.mxu0 0.0
    %1883 = vmatprep.subr.mxu0 0.0
    %1884 = vmatpush1.msra.mxu0 0.0
    %1885 = vmatprep.subr.mxu0 0.0
    %1886 = vmatpush1.msra.mxu0 0.0
    %1887 = vmatprep.subr.mxu0 0.0
    %1888 = vmatpush1.msra.mxu0 0.0
    %1889 = vmatprep.subr.mxu0 0.0
    %1890 = vmatpush1.msra.mxu0 0.0
    %1891 = vmatprep.subr.mxu0 0.0
    %1892 = vmatpush1.msra.mxu0 0.0
    %1893 = vmatprep.subr.mxu0 0.0
    %1894 = vmatpush1.msra.mxu0 0.0
    %1895 = vmatprep.subr.mxu0 0.0
    %1896 = vmatpush1.msra.mxu0 0.0
    %1897 = vmatprep.subr.mxu0 0.0
    %1898 = vmatpush1.msra.mxu0 0.0
    %1899 = vmatprep.subr.mxu0 0.0
    %1900 = vmatpush1.msra.mxu0 0.0
    %1901 = vmatprep.subr.mxu0 0.0
    %1902 = vmatpush1.msra.mxu0 0.0
    %1903 = vmatprep.subr.mxu0 0.0
    %1904 = vmatpush1.msra.mxu0 0.0
    %1905 = vmatprep.subr.mxu0 0.0
    %1906 = vmatpush1.msra.mxu0 0.0
    %1907 = vmatprep.subr.mxu0 0.0
    %1908 = vmatpush1.msra.mxu0 0.0
    %1909 = vmatprep.subr.mxu0 0.0
    %1910 = vmatpush1.msra.mxu0 0.0
    %1911 = vmatprep.subr.mxu0 0.0
    %1912 = vmatpush1.msra.mxu0 0.0
    %1913 = vmatprep.subr.mxu0 0.0
    %1914 = vmatpush1.msra.mxu0 0.0
    %1915 = vmatprep.subr.mxu0 0.0
    %1916 = vmatpush1.msra.mxu0 0.0
    %1917 = vmatprep.subr.mxu0 0.0
    %1918 = vmatpush1.msra.mxu0 0.0
    %1919 = vmatprep.mubr.f32.mxu0 0.0
    %1920 = vmatmul.mubr.f32.gmra.mrb[0].mxu0 %v1403
    %v1921 = vpop.f32.mrb[0].mxu0
    %v1922 = vadd.f32 0.0, %v1921
    %v1923 = vpop.f32.mrb[0].mxu0
    %1924 = vdwg.mxu0
    %1926 = vrot.lane.b32.xlu0 %v1922, 24
    %v1927 = vpop.permute.xlu0 %1926
    %v1929 = vmul.f32 %v1399, %v1927
    %1931 = vrot.lane.b32.xlu0 %v1929, 104
    %v1932 = vpop.permute.xlu0 %1931
    %v1933 = vsel %vm232, %v1932, 0
    %1935 = vmatprep.subr.mxu0 0.0
    %1936 = vmatpush1.msra.mxu0 %v54
    %1937 = vmatprep.subr.mxu0 0.0
    %1938 = vmatpush1.msra.mxu0 %v55
    %1939 = vmatprep.subr.mxu0 0.0
    %1940 = vmatpush1.msra.mxu0 %v56
    %1941 = vmatprep.subr.mxu0 0.0
    %1942 = vmatpush1.msra.mxu0 0.0
    %1943 = vmatprep.subr.mxu0 0.0
    %1944 = vmatpush1.msra.mxu0 0.0
    %1945 = vmatprep.subr.mxu0 0.0
    %1946 = vmatpush1.msra.mxu0 0.0
    %1947 = vmatprep.subr.mxu0 0.0
    %1948 = vmatpush1.msra.mxu0 0.0
    %1949 = vmatprep.subr.mxu0 0.0
    %1950 = vmatpush1.msra.mxu0 0.0
    %1951 = vmatprep.subr.mxu0 0.0
    %1952 = vmatpush1.msra.mxu0 0.0
    %1953 = vmatprep.subr.mxu0 0.0
    %1954 = vmatpush1.msra.mxu0 0.0
    %1955 = vmatprep.subr.mxu0 0.0
    %1956 = vmatpush1.msra.mxu0 0.0
    %1957 = vmatprep.subr.mxu0 0.0
    %1958 = vmatpush1.msra.mxu0 0.0
    %1959 = vmatprep.subr.mxu0 0.0
    %1960 = vmatpush1.msra.mxu0 0.0
    %1961 = vmatprep.subr.mxu0 0.0
    %1962 = vmatpush1.msra.mxu0 0.0
    %1963 = vmatprep.subr.mxu0 0.0
    %1964 = vmatpush1.msra.mxu0 0.0
    %1965 = vmatprep.subr.mxu0 0.0
    %1966 = vmatpush1.msra.mxu0 0.0
    %1967 = vmatprep.subr.mxu0 0.0
    %1968 = vmatpush1.msra.mxu0 0.0
    %1969 = vmatprep.subr.mxu0 0.0
    %1970 = vmatpush1.msra.mxu0 0.0
    %1971 = vmatprep.subr.mxu0 0.0
    %1972 = vmatpush1.msra.mxu0 0.0
    %1973 = vmatprep.subr.mxu0 0.0
    %1974 = vmatpush1.msra.mxu0 0.0
    %1975 = vmatprep.subr.mxu0 0.0
    %1976 = vmatpush1.msra.mxu0 0.0
    %1977 = vmatprep.subr.mxu0 0.0
    %1978 = vmatpush1.msra.mxu0 0.0
    %1979 = vmatprep.subr.mxu0 0.0
    %1980 = vmatpush1.msra.mxu0 0.0
    %1981 = vmatprep.subr.mxu0 0.0
    %1982 = vmatpush1.msra.mxu0 0.0
    %1983 = vmatprep.subr.mxu0 0.0
    %1984 = vmatpush1.msra.mxu0 0.0
    %1985 = vmatprep.subr.mxu0 0.0
    %1986 = vmatpush1.msra.mxu0 0.0
    %1987 = vmatprep.subr.mxu0 0.0
    %1988 = vmatpush1.msra.mxu0 0.0
    %1989 = vmatprep.subr.mxu0 0.0
    %1990 = vmatpush1.msra.mxu0 0.0
    %1991 = vmatprep.subr.mxu0 0.0
    %1992 = vmatpush1.msra.mxu0 0.0
    %1993 = vmatprep.subr.mxu0 0.0
    %1994 = vmatpush1.msra.mxu0 0.0
    %1995 = vmatprep.subr.mxu0 0.0
    %1996 = vmatpush1.msra.mxu0 0.0
    %1997 = vmatprep.subr.mxu0 0.0
    %1998 = vmatpush1.msra.mxu0 0.0
    %1999 = vmatprep.mubr.f32.mxu0 0.0
    %2000 = vmatmul.mubr.f32.gmra.mrb[0].mxu0 %v1933
    %v2001 = vpop.f32.mrb[0].mxu0
    %v2002 = vadd.f32 0.0, %v2001
    %v2003 = vpop.f32.mrb[0].mxu0
    %2004 = vdwg.mxu0
    %v2005 = vmax.f32 %v1552, %v1702
    %v2006 = vmax.f32 %v2005, %v1852
    %v2007 = vmax.f32 %v2006, %v2002
    %v2008 = vsub.f32 %v1552, %v2007
    %v2009 = vmul.f32 %v2008, 1.442695
    %v2010 = vpow.pop %v2009
    %v2011 = vsub.f32 %v1702, %v2007
    %v2012 = vmul.f32 %v2011, 1.442695
    %v2013 = vpow.pop %v2012
    %v2014 = vsub.f32 %v1852, %v2007
    %v2015 = vmul.f32 %v2014, 1.442695
    %v2016 = vpow.pop %v2015
    %v2017 = vsub.f32 %v2002, %v2007
    %v2018 = vmul.f32 %v2017, 1.442695
    %v2019 = vpow.pop %v2018
    %v2020 = vadd.f32 %v2010, %v2013
    %v2021 = vadd.f32 %v2020, %v2016
    %v2022 = vadd.f32 %v2021, %v2019
    %v2023 = vrcp.pop %v2022
    %v2024 = vmul.f32 %v2022, %v2023
    %v2025 = vsub.f32 2.0, %v2024
    %v2026 = vmul.f32 %v2023, %v2025
    %v2027 = vmul.f32 %v2010, %v2026
    %v2029 = vsel %vm918, %v2027, 0
    %2031 = vmatprep.subr.mxu0 0.0
    %2032 = vmatpush1.msra.mxu0 %v924
    %2033 = vmatprep.subr.mxu0 0.0
    %2034 = vmatpush1.msra.mxu0 0.0
    %2035 = vmatprep.subr.mxu0 0.0
    %2036 = vmatpush1.msra.mxu0 0.0
    %2037 = vmatprep.subr.mxu0 0.0
    %2038 = vmatpush1.msra.mxu0 0.0
    %2039 = vmatprep.subr.mxu0 0.0
    %2040 = vmatpush1.msra.mxu0 0.0
    %2041 = vmatprep.subr.mxu0 0.0
    %2042 = vmatpush1.msra.mxu0 0.0
    %2043 = vmatprep.subr.mxu0 0.0
    %2044 = vmatpush1.msra.mxu0 0.0
    %2045 = vmatprep.subr.mxu0 0.0
    %2046 = vmatpush1.msra.mxu0 0.0
    %2047 = vmatprep.subr.mxu0 0.0
    %2048 = vmatpush1.msra.mxu0 0.0
    %2049 = vmatprep.subr.mxu0 0.0
    %2050 = vmatpush1.msra.mxu0 0.0
    %2051 = vmatprep.subr.mxu0 0.0
    %2052 = vmatpush1.msra.mxu0 0.0
    %2053 = vmatprep.subr.mxu0 0.0
    %2054 = vmatpush1.msra.mxu0 0.0
    %2055 = vmatprep.subr.mxu0 0.0
    %2056 = vmatpush1.msra.mxu0 0.0
    %2057 = vmatprep.subr.mxu0 0.0
    %2058 = vmatpush1.msra.mxu0 0.0
    %2059 = vmatprep.subr.mxu0 0.0
    %2060 = vmatpush1.msra.mxu0 0.0
    %2061 = vmatprep.subr.mxu0 0.0
    %2062 = vmatpush1.msra.mxu0 0.0
    %2063 = vmatprep.subr.mxu0 0.0
    %2064 = vmatpush1.msra.mxu0 0.0
    %2065 = vmatprep.subr.mxu0 0.0
    %2066 = vmatpush1.msra.mxu0 0.0
    %2067 = vmatprep.subr.mxu0 0.0
    %2068 = vmatpush1.msra.mxu0 0.0
    %2069 = vmatprep.subr.mxu0 0.0
    %2070 = vmatpush1.msra.mxu0 0.0
    %2071 = vmatprep.subr.mxu0 0.0
    %2072 = vmatpush1.msra.mxu0 0.0
    %2073 = vmatprep.subr.mxu0 0.0
    %2074 = vmatpush1.msra.mxu0 0.0
    %2075 = vmatprep.subr.mxu0 0.0
    %2076 = vmatpush1.msra.mxu0 0.0
    %2077 = vmatprep.subr.mxu0 0.0
    %2078 = vmatpush1.msra.mxu0 0.0
    %2079 = vmatprep.subr.mxu0 0.0
    %2080 = vmatpush1.msra.mxu0 0.0
    %2081 = vmatprep.subr.mxu0 0.0
    %2082 = vmatpush1.msra.mxu0 0.0
    %2083 = vmatprep.subr.mxu0 0.0
    %2084 = vmatpush1.msra.mxu0 0.0
    %2085 = vmatprep.subr.mxu0 0.0
    %2086 = vmatpush1.msra.mxu0 0.0
    %2087 = vmatprep.subr.mxu0 0.0
    %2088 = vmatpush1.msra.mxu0 0.0
    %2089 = vmatprep.subr.mxu0 0.0
    %2090 = vmatpush1.msra.mxu0 0.0
    %2091 = vmatprep.subr.mxu0 0.0
    %2092 = vmatpush1.msra.mxu0 0.0
    %2093 = vmatprep.subr.mxu0 0.0
    %2094 = vmatpush1.msra.mxu0 0.0
    %2095 = vmatprep.mubr.f32.mxu0 0.0
    %2096 = vmatmul.mubr.f32.gmra.mrb[0].mxu0 %v2029
    %v2097 = vpop.f32.mrb[0].mxu0
    %v2098 = vadd.f32 0.0, %v2097
    %v2099 = vpop.f32.mrb[0].mxu0
    %2100 = vdwg.mxu0
    %v2101 = vmul.f32 %v2098, %v1472
    %v2102 = vmul.f32 %v2013, %v2026
    %v2104 = vsel %vm918, %v2102, 0
    %2106 = vmatprep.subr.mxu0 0.0
    %2107 = vmatpush1.msra.mxu0 %v924
    %2108 = vmatprep.subr.mxu0 0.0
    %2109 = vmatpush1.msra.mxu0 0.0
    %2110 = vmatprep.subr.mxu0 0.0
    %2111 = vmatpush1.msra.mxu0 0.0
    %2112 = vmatprep.subr.mxu0 0.0
    %2113 = vmatpush1.msra.mxu0 0.0
    %2114 = vmatprep.subr.mxu0 0.0
    %2115 = vmatpush1.msra.mxu0 0.0
    %2116 = vmatprep.subr.mxu0 0.0
    %2117 = vmatpush1.msra.mxu0 0.0
    %2118 = vmatprep.subr.mxu0 0.0
    %2119 = vmatpush1.msra.mxu0 0.0
    %2120 = vmatprep.subr.mxu0 0.0
    %2121 = vmatpush1.msra.mxu0 0.0
    %2122 = vmatprep.subr.mxu0 0.0
    %2123 = vmatpush1.msra.mxu0 0.0
    %2124 = vmatprep.subr.mxu0 0.0
    %2125 = vmatpush1.msra.mxu0 0.0
    %2126 = vmatprep.subr.mxu0 0.0
    %2127 = vmatpush1.msra.mxu0 0.0
    %2128 = vmatprep.subr.mxu0 0.0
    %2129 = vmatpush1.msra.mxu0 0.0
    %2130 = vmatprep.subr.mxu0 0.0
    %2131 = vmatpush1.msra.mxu0 0.0
    %2132 = vmatprep.subr.mxu0 0.0
    %2133 = vmatpush1.msra.mxu0 0.0
    %2134 = vmatprep.subr.mxu0 0.0
    %2135 = vmatpush1.msra.mxu0 0.0
    %2136 = vmatprep.subr.mxu0 0.0
    %2137 = vmatpush1.msra.mxu0 0.0
    %2138 = vmatprep.subr.mxu0 0.0
    %2139 = vmatpush1.msra.mxu0 0.0
    %2140 = vmatprep.subr.mxu0 0.0
    %2141 = vmatpush1.msra.mxu0 0.0
    %2142 = vmatprep.subr.mxu0 0.0
    %2143 = vmatpush1.msra.mxu0 0.0
    %2144 = vmatprep.subr.mxu0 0.0
    %2145 = vmatpush1.msra.mxu0 0.0
    %2146 = vmatprep.subr.mxu0 0.0
    %2147 = vmatpush1.msra.mxu0 0.0
    %2148 = vmatprep.subr.mxu0 0.0
    %2149 = vmatpush1.msra.mxu0 0.0
    %2150 = vmatprep.subr.mxu0 0.0
    %2151 = vmatpush1.msra.mxu0 0.0
    %2152 = vmatprep.subr.mxu0 0.0
    %2153 = vmatpush1.msra.mxu0 0.0
    %2154 = vmatprep.subr.mxu0 0.0
    %2155 = vmatpush1.msra.mxu0 0.0
    %2156 = vmatprep.subr.mxu0 0.0
    %2157 = vmatpush1.msra.mxu0 0.0
    %2158 = vmatprep.subr.mxu0 0.0
    %2159 = vmatpush1.msra.mxu0 0.0
    %2160 = vmatprep.subr.mxu0 0.0
    %2161 = vmatpush1.msra.mxu0 0.0
    %2162 = vmatprep.subr.mxu0 0.0
    %2163 = vmatpush1.msra.mxu0 0.0
    %2164 = vmatprep.subr.mxu0 0.0
    %2165 = vmatpush1.msra.mxu0 0.0
    %2166 = vmatprep.subr.mxu0 0.0
    %2167 = vmatpush1.msra.mxu0 0.0
    %2168 = vmatprep.subr.mxu0 0.0
    %2169 = vmatpush1.msra.mxu0 0.0
    %2170 = vmatprep.mubr.f32.mxu0 0.0
    %2171 = vmatmul.mubr.f32.gmra.mrb[0].mxu0 %v2104
    %v2172 = vpop.f32.mrb[0].mxu0
    %v2173 = vadd.f32 0.0, %v2172
    %v2174 = vpop.f32.mrb[0].mxu0
    %2175 = vdwg.mxu0
    %v2176 = vmul.f32 %v2173, %v1622
    %v2177 = vadd.f32 %v2101, %v2176
    %v2178 = vmul.f32 %v2016, %v2026
    %v2180 = vsel %vm918, %v2178, 0
    %2182 = vmatprep.subr.mxu0 0.0
    %2183 = vmatpush1.msra.mxu0 %v924
    %2184 = vmatprep.subr.mxu0 0.0
    %2185 = vmatpush1.msra.mxu0 0.0
    %2186 = vmatprep.subr.mxu0 0.0
    %2187 = vmatpush1.msra.mxu0 0.0
    %2188 = vmatprep.subr.mxu0 0.0
    %2189 = vmatpush1.msra.mxu0 0.0
    %2190 = vmatprep.subr.mxu0 0.0
    %2191 = vmatpush1.msra.mxu0 0.0
    %2192 = vmatprep.subr.mxu0 0.0
    %2193 = vmatpush1.msra.mxu0 0.0
    %2194 = vmatprep.subr.mxu0 0.0
    %2195 = vmatpush1.msra.mxu0 0.0
    %2196 = vmatprep.subr.mxu0 0.0
    %2197 = vmatpush1.msra.mxu0 0.0
    %2198 = vmatprep.subr.mxu0 0.0
    %2199 = vmatpush1.msra.mxu0 0.0
    %2200 = vmatprep.subr.mxu0 0.0
    %2201 = vmatpush1.msra.mxu0 0.0
    %2202 = vmatprep.subr.mxu0 0.0
    %2203 = vmatpush1.msra.mxu0 0.0
    %2204 = vmatprep.subr.mxu0 0.0
    %2205 = vmatpush1.msra.mxu0 0.0
    %2206 = vmatprep.subr.mxu0 0.0
    %2207 = vmatpush1.msra.mxu0 0.0
    %2208 = vmatprep.subr.mxu0 0.0
    %2209 = vmatpush1.msra.mxu0 0.0
    %2210 = vmatprep.subr.mxu0 0.0
    %2211 = vmatpush1.msra.mxu0 0.0
    %2212 = vmatprep.subr.mxu0 0.0
    %2213 = vmatpush1.msra.mxu0 0.0
    %2214 = vmatprep.subr.mxu0 0.0
    %2215 = vmatpush1.msra.mxu0 0.0
    %2216 = vmatprep.subr.mxu0 0.0
    %2217 = vmatpush1.msra.mxu0 0.0
    %2218 = vmatprep.subr.mxu0 0.0
    %2219 = vmatpush1.msra.mxu0 0.0
    %2220 = vmatprep.subr.mxu0 0.0
    %2221 = vmatpush1.msra.mxu0 0.0
    %2222 = vmatprep.subr.mxu0 0.0
    %2223 = vmatpush1.msra.mxu0 0.0
    %2224 = vmatprep.subr.mxu0 0.0
    %2225 = vmatpush1.msra.mxu0 0.0
    %2226 = vmatprep.subr.mxu0 0.0
    %2227 = vmatpush1.msra.mxu0 0.0
    %2228 = vmatprep.subr.mxu0 0.0
    %2229 = vmatpush1.msra.mxu0 0.0
    %2230 = vmatprep.subr.mxu0 0.0
    %2231 = vmatpush1.msra.mxu0 0.0
    %2232 = vmatprep.subr.mxu0 0.0
    %2233 = vmatpush1.msra.mxu0 0.0
    %2234 = vmatprep.subr.mxu0 0.0
    %2235 = vmatpush1.msra.mxu0 0.0
    %2236 = vmatprep.subr.mxu0 0.0
    %2237 = vmatpush1.msra.mxu0 0.0
    %2238 = vmatprep.subr.mxu0 0.0
    %2239 = vmatpush1.msra.mxu0 0.0
    %2240 = vmatprep.subr.mxu0 0.0
    %2241 = vmatpush1.msra.mxu0 0.0
    %2242 = vmatprep.subr.mxu0 0.0
    %2243 = vmatpush1.msra.mxu0 0.0
    %2244 = vmatprep.subr.mxu0 0.0
    %2245 = vmatpush1.msra.mxu0 0.0
    %2246 = vmatprep.mubr.f32.mxu0 0.0
    %2247 = vmatmul.mubr.f32.gmra.mrb[0].mxu0 %v2180
    %v2248 = vpop.f32.mrb[0].mxu0
    %v2249 = vadd.f32 0.0, %v2248
    %v2250 = vpop.f32.mrb[0].mxu0
    %2251 = vdwg.mxu0
    %v2252 = vmul.f32 %v2249, %v1772
    %v2253 = vadd.f32 %v2177, %v2252
    %v2254 = vmul.f32 %v2019, %v2026
    %v2256 = vsel %vm918, %v2254, 0
    %2258 = vmatprep.subr.mxu0 0.0
    %2259 = vmatpush1.msra.mxu0 %v924
    %2260 = vmatprep.subr.mxu0 0.0
    %2261 = vmatpush1.msra.mxu0 0.0
    %2262 = vmatprep.subr.mxu0 0.0
    %2263 = vmatpush1.msra.mxu0 0.0
    %2264 = vmatprep.subr.mxu0 0.0
    %2265 = vmatpush1.msra.mxu0 0.0
    %2266 = vmatprep.subr.mxu0 0.0
    %2267 = vmatpush1.msra.mxu0 0.0
    %2268 = vmatprep.subr.mxu0 0.0
    %2269 = vmatpush1.msra.mxu0 0.0
    %2270 = vmatprep.subr.mxu0 0.0
    %2271 = vmatpush1.msra.mxu0 0.0
    %2272 = vmatprep.subr.mxu0 0.0
    %2273 = vmatpush1.msra.mxu0 0.0
    %2274 = vmatprep.subr.mxu0 0.0
    %2275 = vmatpush1.msra.mxu0 0.0
    %2276 = vmatprep.subr.mxu0 0.0
    %2277 = vmatpush1.msra.mxu0 0.0
    %2278 = vmatprep.subr.mxu0 0.0
    %2279 = vmatpush1.msra.mxu0 0.0
    %2280 = vmatprep.subr.mxu0 0.0
    %2281 = vmatpush1.msra.mxu0 0.0
    %2282 = vmatprep.subr.mxu0 0.0
    %2283 = vmatpush1.msra.mxu0 0.0
    %2284 = vmatprep.subr.mxu0 0.0
    %2285 = vmatpush1.msra.mxu0 0.0
    %2286 = vmatprep.subr.mxu0 0.0
    %2287 = vmatpush1.msra.mxu0 0.0
    %2288 = vmatprep.subr.mxu0 0.0
    %2289 = vmatpush1.msra.mxu0 0.0
    %2290 = vmatprep.subr.mxu0 0.0
    %2291 = vmatpush1.msra.mxu0 0.0
    %2292 = vmatprep.subr.mxu0 0.0
    %2293 = vmatpush1.msra.mxu0 0.0
    %2294 = vmatprep.subr.mxu0 0.0
    %2295 = vmatpush1.msra.mxu0 0.0
    %2296 = vmatprep.subr.mxu0 0.0
    %2297 = vmatpush1.msra.mxu0 0.0
    %2298 = vmatprep.subr.mxu0 0.0
    %2299 = vmatpush1.msra.mxu0 0.0
    %2300 = vmatprep.subr.mxu0 0.0
    %2301 = vmatpush1.msra.mxu0 0.0
    %2302 = vmatprep.subr.mxu0 0.0
    %2303 = vmatpush1.msra.mxu0 0.0
    %2304 = vmatprep.subr.mxu0 0.0
    %2305 = vmatpush1.msra.mxu0 0.0
    %2306 = vmatprep.subr.mxu0 0.0
    %2307 = vmatpush1.msra.mxu0 0.0
    %2308 = vmatprep.subr.mxu0 0.0
    %2309 = vmatpush1.msra.mxu0 0.0
    %2310 = vmatprep.subr.mxu0 0.0
    %2311 = vmatpush1.msra.mxu0 0.0
    %2312 = vmatprep.subr.mxu0 0.0
    %2313 = vmatpush1.msra.mxu0 0.0
    %2314 = vmatprep.subr.mxu0 0.0
    %2315 = vmatpush1.msra.mxu0 0.0
    %2316 = vmatprep.subr.mxu0 0.0
    %2317 = vmatpush1.msra.mxu0 0.0
    %2318 = vmatprep.subr.mxu0 0.0
    %2319 = vmatpush1.msra.mxu0 0.0
    %2320 = vmatprep.subr.mxu0 0.0
    %2321 = vmatpush1.msra.mxu0 0.0
    %2322 = vmatprep.mubr.f32.mxu0 0.0
    %2323 = vmatmul.mubr.f32.gmra.mrb[0].mxu0 %v2256
    %v2324 = vpop.f32.mrb[0].mxu0
    %v2325 = vadd.f32 0.0, %v2324
    %v2326 = vpop.f32.mrb[0].mxu0
    %2327 = vdwg.mxu0
    %v2328 = vmul.f32 %v2325, %v1922
    %v2329 = vadd.f32 %v2253, %v2328
    %v2330 = vlaneseq
    %v2331 = vshrl.u32 %v2330, 7
    %v2332 = vsub.s32 1, %v2331
    %v2333 = vrot.slane %v33, %v2332
    %2337 = vrot.lane.b32.xlu0 %v30, 120
    %v2338 = vpop.permute.xlu0 %2337
    %2339 = vrot.lane.b32.xlu0 %v31, 120
    %v2340 = vpop.permute.xlu0 %2339
    %2341 = vrot.lane.b32.xlu0 %v32, 120
    %v2342 = vpop.permute.xlu0 %2341
    %v2347 = vsel %vm232, %v2329, 0
    %2349 = vmatprep.subr.mxu0 0.0
    %2350 = vmatpush1.msra.mxu0 %v2338
    %2351 = vmatprep.subr.mxu0 0.0
    %2352 = vmatpush1.msra.mxu0 %v2340
    %2353 = vmatprep.subr.mxu0 0.0
    %2354 = vmatpush1.msra.mxu0 %v2342
    %2355 = vmatprep.subr.mxu0 0.0
    %2356 = vmatpush1.msra.mxu0 0.0
    %2357 = vmatprep.subr.mxu0 0.0
    %2358 = vmatpush1.msra.mxu0 0.0
    %2359 = vmatprep.subr.mxu0 0.0
    %2360 = vmatpush1.msra.mxu0 0.0
    %2361 = vmatprep.subr.mxu0 0.0
    %2362 = vmatpush1.msra.mxu0 0.0
    %2363 = vmatprep.subr.mxu0 0.0
    %2364 = vmatpush1.msra.mxu0 0.0
    %2365 = vmatprep.subr.mxu0 0.0
    %2366 = vmatpush1.msra.mxu0 0.0
    %2367 = vmatprep.subr.mxu0 0.0
    %2368 = vmatpush1.msra.mxu0 0.0
    %2369 = vmatprep.subr.mxu0 0.0
    %2370 = vmatpush1.msra.mxu0 0.0
    %2371 = vmatprep.subr.mxu0 0.0
    %2372 = vmatpush1.msra.mxu0 0.0
    %2373 = vmatprep.subr.mxu0 0.0
    %2374 = vmatpush1.msra.mxu0 0.0
    %2375 = vmatprep.subr.mxu0 0.0
    %2376 = vmatpush1.msra.mxu0 0.0
    %2377 = vmatprep.subr.mxu0 0.0
    %2378 = vmatpush1.msra.mxu0 0.0
    %2379 = vmatprep.subr.mxu0 0.0
    %2380 = vmatpush1.msra.mxu0 0.0
    %2381 = vmatprep.subr.mxu0 0.0
    %2382 = vmatpush1.msra.mxu0 0.0
    %2383 = vmatprep.subr.mxu0 0.0
    %2384 = vmatpush1.msra.mxu0 0.0
    %2385 = vmatprep.subr.mxu0 0.0
    %2386 = vmatpush1.msra.mxu0 0.0
    %2387 = vmatprep.subr.mxu0 0.0
    %2388 = vmatpush1.msra.mxu0 0.0
    %2389 = vmatprep.subr.mxu0 0.0
    %2390 = vmatpush1.msra.mxu0 0.0
    %2391 = vmatprep.subr.mxu0 0.0
    %2392 = vmatpush1.msra.mxu0 0.0
    %2393 = vmatprep.subr.mxu0 0.0
    %2394 = vmatpush1.msra.mxu0 0.0
    %2395 = vmatprep.subr.mxu0 0.0
    %2396 = vmatpush1.msra.mxu0 0.0
    %2397 = vmatprep.subr.mxu0 0.0
    %2398 = vmatpush1.msra.mxu0 0.0
    %2399 = vmatprep.subr.mxu0 0.0
    %2400 = vmatpush1.msra.mxu0 0.0
    %2401 = vmatprep.subr.mxu0 0.0
    %2402 = vmatpush1.msra.mxu0 0.0
    %2403 = vmatprep.subr.mxu0 0.0
    %2404 = vmatpush1.msra.mxu0 0.0
    %2405 = vmatprep.subr.mxu0 0.0
    %2406 = vmatpush1.msra.mxu0 0.0
    %2407 = vmatprep.subr.mxu0 0.0
    %2408 = vmatpush1.msra.mxu0 0.0
    %2409 = vmatprep.subr.mxu0 0.0
    %2410 = vmatpush1.msra.mxu0 0.0
    %2411 = vmatprep.subr.mxu0 0.0
    %2412 = vmatpush1.msra.mxu0 0.0
    %2413 = vmatprep.mubr.f32.mxu0 0.0
    %2414 = vmatmul.mubr.f32.gmra.mrb[0].mxu0 %v2347
    %v2415 = vpop.f32.mrb[0].mxu0
    %v2416 = vadd.f32 %v2333, %v2415
    %v2417 = vpop.f32.mrb[0].mxu0
    %2418 = vdwg.mxu0
    %v2419 = vmul.f32 %v2416, 0.5
    %v2420 = vtanh.pop %v2419
    %v2421 = vadd.f32 %v2420, 1.0
    %v2422 = vmul.f32 %v2421, 0.5
    %v2423 = vmul.f32 %v2416, %v2422
    %v2424 = vtanh.pop %v2423
    %v2425 = vadd.f32 %v2424, 1.0
    %v2426 = vmul.f32 %v2425, 3.5
    %v2427 = vadd.f32 %v2426, -5.0
    %v2428 = vmul.f32 %v2427, 1.442695
    %v2429 = vpow.pop %v2428
    %2431 = vrot.lane.b32.xlu0 %v2429, 8
    %v2432 = vpop.permute.xlu0 %2431
    %v2434 = vsel %vm1307, %v1306, %v2432
    %vm2435 = vcmask 123904
    %2436 = vst.msk [vmem:[#allocation2] sm:$0x3] %vm2435, %v2434
    // Predicated region
    $region26: #{tpu_custom_call.1} parent=1 // pred_check
      _
    $region27: #{tpu_custom_call.1} parent=1 // pred_check_branch
      %2438 = sbr.rel (0) target = $region29
    $region28: #{tpu_custom_call.1} parent=1 // pred_region
      %s2440 = ssub.s32 32, 32
      %2441 = vsyncadd [#allocation3], %s2440
      %s2443 = sshll.u32 [#allocation2], 4
      %s2444 = int_to_ptr.vmem [resolvable:$true] %s2443
      %2446 = dma.vmem_to_hbm [thread:$0]  %s2444, 32, %s6, [#allocation3]
    $region29: #{tpu_custom_call.1} parent=1 // pred_fallthru
      _
    // Predicated region
    $region30: #{tpu_custom_call.1} parent=1 // pred_check
      _
    $region31: #{tpu_custom_call.1} parent=1 // pred_check_branch
      %2448 = sbr.rel (0) target = $region33
    $region32: #{tpu_custom_call.1} parent=1 // pred_region
      %2449 = dma.done [#allocation3], 32
    $region33: #{tpu_custom_call.1} parent=1 // pred_fallthru
      _
    %2450 = vsyncpa [#allocation3], 1

</llo_original>
